<compile_context>
chip_gen: v7x
topology: tpu7x:2x2x1
jax: 0.10.0
libtpu: 0.0.40
codegen_flags: <defaults>
</compile_context>

<pallas_src>
import functools

import jax
import jax.numpy as jnp
from jax.experimental import pallas as pl
from jax.experimental.pallas import tpu as pltpu


def _qknorm_kernel_3d(q_ref, k_ref, w_ref, qo_ref, ko_ref, *, eps):
    # q_ref / k_ref / qo_ref / ko_ref: (TM, H, D); w_ref: (1, H, 1) f32 (grid-resident).
    q = q_ref[...]
    k = k_ref[...]
    ss_q = jnp.sum(jnp.square(q.astype(jnp.float32)), axis=-1, keepdims=True)
    ss_k = jnp.sum(jnp.square(k.astype(jnp.float32)), axis=-1, keepdims=True)
    # x / max(||x||, eps) == x * rsqrt(max(||x||^2, eps^2)); learned weight folded into
    # the tiny (TM, H, 1) scale column -> no extra full-tile multiply.
    inv_q = jax.lax.rsqrt(jnp.maximum(ss_q, eps * eps)) * w_ref[...]
    inv_k = jax.lax.rsqrt(jnp.maximum(ss_k, eps * eps))
    qo_ref[...] = (q * inv_q).astype(qo_ref.dtype)
    ko_ref[...] = (k * inv_k).astype(ko_ref.dtype)


def _qknorm_kernel_flat(q_ref, k_ref, w_ref, bd_ref, qo_ref, ko_ref, *, eps, precision):
    # q_ref / k_ref / qo_ref / ko_ref: (TM, H*D); w_ref: (1, H*D) f32; bd_ref: (H*D, H*D)
    # block-diagonal ones. Both constants are grid-resident (constant index_maps).
    q = q_ref[...]
    k = k_ref[...]
    bd = bd_ref[...]
    # Segmented (per-head) sum-of-squares as ONE MXU matmul, result already broadcast
    # per lane; f32 accumulation via preferred_element_type.
    ss_q = jnp.dot(q * q, bd, preferred_element_type=jnp.float32, precision=precision)
    ss_k = jnp.dot(k * k, bd, preferred_element_type=jnp.float32, precision=precision)
    inv_q = jax.lax.rsqrt(jnp.maximum(ss_q, eps * eps))
    inv_k = jax.lax.rsqrt(jnp.maximum(ss_k, eps * eps))
    # Per-head weight applied via the resident (1, H*D) f32 row (VPU work, hidden by DMA).
    qo_ref[...] = (q * (inv_q * w_ref[...])).astype(qo_ref.dtype)
    ko_ref[...] = (k * inv_k).astype(ko_ref.dtype)


def _choose_row_tile(num_rows, row_bytes, target_block_bytes=2 << 20):
    """Row tile: ~target bytes/block, multiple of 8, and >= 2 grid steps (v7x megacore)."""
    if num_rows <= 8:
        return num_rows                                   # single full-extent block
    tm = max(8, (target_block_bytes // max(row_bytes, 1)) // 8 * 8)
    tm = min(tm, num_rows // 8 * 8)                       # never exceed the row count
    tm = min(tm, max(8, (num_rows // 2 + 7) // 8 * 8))    # keep at least 2 grid steps
    return tm


def _vmem_limit_bytes(tile_in_bytes, tile_f32_bytes, resident_bytes):
    # 2x (double-buffer) x 4 pipelined tiles (q, k, qo, ko) + in-kernel f32 temporaries
    # + grid-resident constants + slack; capped so it also fits v7x's 64 MiB VMEM.
    est = 2 * 4 * tile_in_bytes + 6 * tile_f32_bytes + resident_bytes + (4 << 20)
    return int(min(max(est, 32 << 20), 48 << 20))


def qk_norm(q: jax.Array, k: jax.Array, weight: jax.Array, *, eps: float = 1e-12):
    """q, k: [B, S, H, D]; weight: [H]. Returns (normalize(q)*w_per_head, normalize(k))."""
    B, S, H, D = q.shape
    assert k.shape == q.shape, "q and k must have the same shape."
    assert weight.shape == (H,), "Shape mismatch in head dimension."
    R = B * S
    eps = float(eps)  # Python float -> baked in as a literal (no captured constant).

    if D % 128 == 0:
        # ---- 3-D (TM, H, D) path: natural lane-axis reduce, weight folded into scale col.
        q3 = q.reshape(R, H, D)
        k3 = k.reshape(R, H, D)
        w_col = weight.astype(jnp.float32).reshape(1, H, 1)
        row_bytes = H * D * q.dtype.itemsize
        tm = _choose_row_tile(R, row_bytes)
        grid = (pl.cdiv(R, tm),)
        kernel = functools.partial(_qknorm_kernel_3d, eps=eps)
        vmem_limit = _vmem_limit_bytes(tm * row_bytes, tm * H * D * 4, H * 4)

        q_out, k_out = pl.pallas_call(
            kernel,
            out_shape=(
                jax.ShapeDtypeStruct((R, H, D), q.dtype),
                jax.ShapeDtypeStruct((R, H, D), k.dtype),
            ),
            grid_spec=pltpu.PrefetchScalarGridSpec(
                num_scalar_prefetch=0,
                grid=grid,
                in_specs=[
                    pl.BlockSpec((tm, H, D), lambda i: (i, 0, 0)),
                    pl.BlockSpec((tm, H, D), lambda i: (i, 0, 0)),
                    pl.BlockSpec((1, H, 1), lambda i: (0, 0, 0)),  # constant -> resident
                ],
                out_specs=[
                    pl.BlockSpec((tm, H, D), lambda i: (i, 0, 0)),
                    pl.BlockSpec((tm, H, D), lambda i: (i, 0, 0)),
                ],
            ),
            compiler_params=pltpu.CompilerParams(
                dimension_semantics=("parallel",),
                vmem_limit_bytes=vmem_limit,
            ),
        )(q3, k3, w_col)
    else:
        # ---- lane-dense (TM, H*D) path: segmented sum-of-squares on the (idle) MXU.
        HD = H * D
        q2 = q.reshape(R, HD)
        k2 = k.reshape(R, HD)
        # Per-head weight expanded once to a lane-dense f32 row: [w0]*D, [w1]*D, ...
        w_row = jnp.repeat(weight.astype(jnp.float32), D).reshape(1, HD)
        # Block-diagonal ones: bd[i, j] = 1 iff lanes i and j belong to the same head.
        bd = jnp.kron(jnp.eye(H, dtype=q.dtype), jnp.ones((D, D), dtype=q.dtype))
        row_bytes = HD * q.dtype.itemsize
        tm = _choose_row_tile(R, row_bytes)
        grid = (pl.cdiv(R, tm),)
        # f32 inputs need the multi-pass MXU path for an accurate sum-of-squares;
        # bf16/fp8 inputs keep the fast single-pass path (f32 accumulation either way).
        precision = (
            jax.lax.Precision.HIGHEST
            if q.dtype.itemsize >= 4
            else jax.lax.Precision.DEFAULT
        )
        kernel = functools.partial(_qknorm_kernel_flat, eps=eps, precision=precision)
        resident = HD * 4 + HD * HD * q.dtype.itemsize
        vmem_limit = _vmem_limit_bytes(tm * row_bytes, tm * HD * 4, resident)

        q_out, k_out = pl.pallas_call(
            kernel,
            out_shape=(
                jax.ShapeDtypeStruct((R, HD), q.dtype),
                jax.ShapeDtypeStruct((R, HD), k.dtype),
            ),
            grid_spec=pltpu.PrefetchScalarGridSpec(
                num_scalar_prefetch=0,
                grid=grid,
                in_specs=[
                    pl.BlockSpec((tm, HD), lambda i: (i, 0)),
                    pl.BlockSpec((tm, HD), lambda i: (i, 0)),
                    pl.BlockSpec((1, HD), lambda i: (0, 0)),    # constant -> resident
                    pl.BlockSpec((HD, HD), lambda i: (0, 0)),   # constant -> resident
                ],
                out_specs=[
                    pl.BlockSpec((tm, HD), lambda i: (i, 0)),
                    pl.BlockSpec((tm, HD), lambda i: (i, 0)),
                ],
            ),
            compiler_params=pltpu.CompilerParams(
                dimension_semantics=("parallel",),
                vmem_limit_bytes=vmem_limit,
            ),
        )(q2, k2, w_row, bd)

    return q_out.reshape(B, S, H, D), k_out.reshape(B, S, H, D)


if __name__ == "__main__":
    def _reference(q, k, weight, eps=1e-12):
        def l2n(x):
            n = jnp.sqrt(jnp.sum(x * x, axis=-1, keepdims=True))
            return x / jnp.maximum(n, eps)
        return l2n(q) * weight[None, None, :, None], l2n(k)

    # Case 1: small shapes consistent with the module (exercises the MXU path, D < 128).
    B, S, H, D = 2, 8, 4, 32
    scale = 5.0  # QKScaleUp init: weight = [scale] * num_heads
    key = jax.random.PRNGKey(0)
    kq, kk = jax.random.split(key)
    q = jax.random.normal(kq, (B, S, H, D), dtype=jnp.float32)
    k = jax.random.normal(kk, (B, S, H, D), dtype=jnp.float32)
    weight = jnp.full((H,), float(scale), dtype=jnp.float32)

    q_out, k_out = jax.block_until_ready(qk_norm(q, k, weight))
    ref_q, ref_k = _reference(q, k, weight)
    assert q_out.shape == q.shape and k_out.shape == k.shape
    assert jnp.allclose(q_out, ref_q, atol=1e-5, rtol=1e-5)
    assert jnp.allclose(k_out, ref_k, atol=1e-5, rtol=1e-5)

    # Case 2: exercises the 3-D lane-reduce path (D % 128 == 0).
    B2, S2, H2, D2 = 2, 8, 2, 128
    kq2, kk2 = jax.random.split(jax.random.PRNGKey(1))
    qb = jax.random.normal(kq2, (B2, S2, H2, D2), dtype=jnp.float32)
    kb = jax.random.normal(kk2, (B2, S2, H2, D2), dtype=jnp.float32)
    weight2 = jnp.full((H2,), 3.0, dtype=jnp.float32)
    qb_out, kb_out = jax.block_until_ready(qk_norm(qb, kb, weight2))
    ref_qb, ref_kb = _reference(qb, kb, weight2)
    assert jnp.allclose(qb_out, ref_qb, atol=1e-5, rtol=1e-5)
    assert jnp.allclose(kb_out, ref_kb, atol=1e-5, rtol=1e-5)

    print("KERNEL_OK")
</pallas_src>

<mosaic_0001>
module attributes {stable_mosaic.version = 11 : i64} {
  func.func @_qknorm_kernel_flat(%arg0: i32, %arg1: memref<8x128xf32, #tpu.memory_space<vmem>>, %arg2: memref<8x128xf32, #tpu.memory_space<vmem>>, %arg3: memref<1x128xf32, #tpu.memory_space<vmem>>, %arg4: memref<128x128xf32, #tpu.memory_space<vmem>>, %arg5: memref<8x128xf32, #tpu.memory_space<vmem>>, %arg6: memref<8x128xf32, #tpu.memory_space<vmem>>) attributes {dimension_semantics = [#tpu.dimension_semantics<parallel>], iteration_bounds = array<i64: 2>, scalar_prefetch = 0 : i64, scratch_operands = 0 : i64, tpu.core_type = #tpu.core_type<tc>, window_params = [{transform_indices = @transform_0, window_bounds = array<i64: 8, 128>}, {transform_indices = @transform_1, window_bounds = array<i64: 8, 128>}, {pipeline_mode = #tpu.pipeline_mode<synchronous>, transform_indices = @transform_2, window_bounds = array<i64: 1, 128>}, {pipeline_mode = #tpu.pipeline_mode<synchronous>, transform_indices = @transform_3, window_bounds = array<i64: 128, 128>}, {transform_indices = @transform_4, window_bounds = array<i64: 8, 128>}, {transform_indices = @transform_5, window_bounds = array<i64: 8, 128>}]} {
    %c0 = arith.constant 0 : index
    %c0_0 = arith.constant 0 : index
    %0 = vector.load %arg1[%c0, %c0_0] : memref<8x128xf32, #tpu.memory_space<vmem>>, vector<8x128xf32>
    %c0_1 = arith.constant 0 : index
    %c0_2 = arith.constant 0 : index
    %1 = vector.load %arg2[%c0_1, %c0_2] : memref<8x128xf32, #tpu.memory_space<vmem>>, vector<8x128xf32>
    %c0_3 = arith.constant 0 : index
    %c0_4 = arith.constant 0 : index
    %2 = vector.load %arg4[%c0_3, %c0_4] : memref<128x128xf32, #tpu.memory_space<vmem>>, vector<128x128xf32>
    %3 = arith.mulf %0, %0 : vector<8x128xf32>
    %cst = arith.constant dense<0.000000e+00> : vector<8x128xf32>
    %4 = tpu.matmul %3, %2, %cst {dimension_numbers = #tpu.dot_dimension_numbers<[1], [0], [0], [1], [0, 0, 1, 1], [], []>, precision = #tpu.contract_precision<fp32>} : vector<8x128xf32>, vector<128x128xf32>, vector<8x128xf32> -> vector<8x128xf32>
    %5 = arith.mulf %1, %1 : vector<8x128xf32>
    %cst_5 = arith.constant dense<0.000000e+00> : vector<8x128xf32>
    %6 = tpu.matmul %5, %2, %cst_5 {dimension_numbers = #tpu.dot_dimension_numbers<[1], [0], [0], [1], [0, 0, 1, 1], [], []>, precision = #tpu.contract_precision<fp32>} : vector<8x128xf32>, vector<128x128xf32>, vector<8x128xf32> -> vector<8x128xf32>
    %cst_6 = arith.constant 1.000000e-24 : f32
    %7 = vector.broadcast %cst_6 : f32 to vector<8x128xf32>
    %8 = arith.maximumf %4, %7 : vector<8x128xf32>
    %9 = math.rsqrt %8 : vector<8x128xf32>
    %cst_7 = arith.constant 1.000000e-24 : f32
    %10 = vector.broadcast %cst_7 : f32 to vector<8x128xf32>
    %11 = arith.maximumf %6, %10 : vector<8x128xf32>
    %12 = math.rsqrt %11 : vector<8x128xf32>
    %c0_8 = arith.constant 0 : index
    %c0_9 = arith.constant 0 : index
    %13 = vector.load %arg3[%c0_8, %c0_9] : memref<1x128xf32, #tpu.memory_space<vmem>>, vector<1x128xf32>
    %14 = vector.broadcast %13 : vector<1x128xf32> to vector<8x128xf32>
    %15 = arith.mulf %9, %14 : vector<8x128xf32>
    %16 = arith.mulf %0, %15 : vector<8x128xf32>
    %c0_10 = arith.constant 0 : index
    %c0_11 = arith.constant 0 : index
    %17 = vector.load %arg5[%c0_10, %c0_11] : memref<8x128xf32, #tpu.memory_space<vmem>>, vector<8x128xf32>
    tpu.vector_store %arg5[%c0_10, %c0_11], %16 {strides = array<i32>} : memref<8x128xf32, #tpu.memory_space<vmem>>, vector<8x128xf32>,
    %18 = arith.mulf %1, %12 : vector<8x128xf32>
    %c0_12 = arith.constant 0 : index
    %c0_13 = arith.constant 0 : index
    %19 = vector.load %arg6[%c0_12, %c0_13] : memref<8x128xf32, #tpu.memory_space<vmem>>, vector<8x128xf32>
    tpu.vector_store %arg6[%c0_12, %c0_13], %18 {strides = array<i32>} : memref<8x128xf32, #tpu.memory_space<vmem>>, vector<8x128xf32>,
    return
  }
  func.func @transform_0(%arg0: i32) -> (i32, i32) {
    %c0_i32 = arith.constant 0 : i32
    %c0_i32_0 = arith.constant 0 : i32
    return %arg0, %c0_i32 : i32, i32
  }
  func.func @transform_1(%arg0: i32) -> (i32, i32) {
    %c0_i32 = arith.constant 0 : i32
    %c0_i32_0 = arith.constant 0 : i32
    return %arg0, %c0_i32 : i32, i32
  }
  func.func @transform_2(%arg0: i32) -> (i32, i32) {
    %c0_i32 = arith.constant 0 : i32
    %c0_i32_0 = arith.constant 0 : i32
    %c0_i32_1 = arith.constant 0 : i32
    return %c0_i32, %c0_i32_0 : i32, i32
  }
  func.func @transform_3(%arg0: i32) -> (i32, i32) {
    %c0_i32 = arith.constant 0 : i32
    %c0_i32_0 = arith.constant 0 : i32
    %c0_i32_1 = arith.constant 0 : i32
    return %c0_i32, %c0_i32_0 : i32, i32
  }
  func.func @transform_4(%arg0: i32) -> (i32, i32) {
    %c0_i32 = arith.constant 0 : i32
    %c0_i32_0 = arith.constant 0 : i32
    return %arg0, %c0_i32 : i32, i32
  }
  func.func @transform_5(%arg0: i32) -> (i32, i32) {
    %c0_i32 = arith.constant 0 : i32
    %c0_i32_0 = arith.constant 0 : i32
    return %arg0, %c0_i32 : i32, i32
  }
}

</mosaic_0001>

<llo_original>
// kernel: tpu_custom_call.1
$region0: #{tpu_custom_call.1}
  #allocation0 [shape = 'u32[]', space=smem, size = 0x4, offset = 0x4, fixed_abs, tag = 'smem constant byte address 0x4 - core index']
  #allocation1 [shape = 'u32[144,128]{1,0:T(1,128)}', space=vmem, size = 0x12000, scoped, tag = 'internal scratch']
  %s0 = inlined_call_operand.hbm [shape: f32[16,128], index: 0, kind: input, shape index: {}]
  %s1 = inlined_call_operand.hbm [shape: f32[16,128], index: 1, kind: input, shape index: {}]
  %s2 = inlined_call_operand.vmem [shape: f32[1,128], index: 2, kind: input, shape index: {}]
  %s3 = inlined_call_operand.hbm [shape: f32[128,128], index: 3, kind: input, shape index: {}]
  %s4 = inlined_call_operand.hbm [shape: f32[16,128], index: 4, kind: output, shape index: {0}]
  %s5 = inlined_call_operand.hbm [shape: f32[16,128], index: 5, kind: output, shape index: {1}]
  %6 = xla_tuple %s4, %s5
  %s7 = sld [smem:[#allocation0]]
  $region69: #{tpu_custom_call.1} parent=0
    _
  %s9 = ssub.s32 1, %s7
  %s10 = scalar_select 0, %s9, %s7
  $region1: #{tpu_custom_call.1} parent=0
    #allocation2 [shape = 'u8[8192]{0}', space=vmem, size = 0x2000, scoped, tag = 'input window, operand 0']
    #allocation3 [shape = 's32[2]{0}', space=sflag, size = 0x8, scoped, tag = 'scoped memory for tpu_custom_call.1']
    #allocation4 [shape = 's32[2]{0}', space=sflag, size = 0x8, scoped, tag = 'scoped memory for tpu_custom_call.1']
    #allocation5 [shape = 'u8[8192]{0}', space=vmem, size = 0x2000, scoped, tag = 'input window, operand 1']
    #allocation6 [shape = 's32[2]{0}', space=sflag, size = 0x8, scoped, tag = 'scoped memory for tpu_custom_call.1']
    #allocation7 [shape = 'u8[65536]{0}', space=vmem, size = 0x10000, scoped, tag = 'input window, operand 3, single buffered']
    #allocation8 [shape = 'u8[8192]{0}', space=vmem, size = 0x2000, scoped, tag = 'output window, operand 0']
    #allocation9 [shape = 'u8[8192]{0}', space=vmem, size = 0x2000, scoped, tag = 'output window, operand 1']
    #allocation10 [shape = 's32[2]{0}', space=sflag, size = 0x8, scoped, tag = 'scoped memory for tpu_custom_call.1']
    %11 = vsyncpa [#allocation3], 0
    %s12 = scalar_lea.sflag [#allocation3], 1
    %13 = vsyncpa %s12, 0
    %14 = vsyncpa [#allocation6], 0
    %s15 = scalar_lea.sflag [#allocation6], 1
    %16 = vsyncpa %s15, 0
    %17 = vsyncpa [#allocation4], 0
    %s18 = scalar_lea.sflag [#allocation4], 1
    %19 = vsyncpa %s18, 0
    %20 = vsyncpa [#allocation10], 0
    %s21 = scalar_lea.sflag [#allocation10], 1
    %22 = vsyncpa %s21, 0
    loop: start=0, step=1, limit=4
    $region2: #{tpu_custom_call.1} parent=1 // loop_pre_header
      _
    $region3: #{tpu_custom_call.1} parent=1 // loop_header
      %s24 = sphi 0, %s28
      %p25 = scmp.ge.s32.totalorder %s24, 4
      %s34 = sphi 0, %s36
      %s37 = sphi 0, %s34
      %s38 = sphi 0, %s37
      %s54 = sphi 0, %s38
      %s60 = sphi 0, %s62
      %s63 = sphi 0, %s60
      %s64 = sphi 0, %s63
      %s80 = sphi 0, %s64
      %s84 = sphi 0, %s84
      %s86 = sphi 0, %s84
      %s87 = sphi 0, %s86
      %s101 = sphi 0, %s87
      %s105 = sphi 0, %s105
      %s107 = sphi 0, %s105
      %s108 = sphi 0, %s107
      %s122 = sphi 0, %s108
      %s128 = sphi 0, %s130
      %s131 = sphi 0, %s128
      %s132 = sphi 0, %s131
      %s148 = sphi 0, %s132
      %s154 = sphi 0, %s156
      %s157 = sphi 0, %s154
      %s158 = sphi 0, %s157
      %s174 = sphi 0, %s158
    $region4: #{tpu_custom_call.1} parent=1 // loop_header_branch
      %27 = sbr.rel (%p25) target = $region8
    $region5: #{tpu_custom_call.1} parent=1 // loop_body
      %s29 = ssub.s32 %s24, 1
      %s30 = ssub.s32 %s24, 2
      %s31 = sadd.s32 %s24, 1
      %s32 = ssub.s32 %s24, %s31
      %p33 = scmp.eq.s32.totalorder %s32, 0
      %s35 = sadd.s32 %s34, 1
      %s36 = scalar_select %p33, %s34, %s35
      %p39 = pneg %p33
      %p40 = scmp.eq.s32.totalorder %s24, 1
      %p41 = por %p39, %p40
      %p42 = scmp.ne.s32.totalorder %s34, %s37
      %p43 = scmp.eq.s32.totalorder %s24, 0
      %p44 = por %p42, %p43
      %p45 = scmp.ne.s32.totalorder %s34, %s37
      %p46 = scmp.eq.s32.totalorder %s29, 1
      %p47 = por %p45, %p46
      %p48 = scmp.ne.s32.totalorder %s37, %s38
      %p49 = scmp.eq.s32.totalorder %s29, 0
      %p50 = por %p48, %p49
      %p51 = scmp.ne.s32.totalorder %s37, %s38
      %p52 = scmp.eq.s32.totalorder %s30, 1
      %p53 = por %p51, %p52
      %p55 = scmp.ne.s32.totalorder %s38, %s54
      %p56 = scmp.eq.s32.totalorder %s30, 0
      %p57 = por %p55, %p56
      %s58 = ssub.s32 %s24, %s31
      %p59 = scmp.eq.s32.totalorder %s58, 0
      %s61 = sadd.s32 %s60, 1
      %s62 = scalar_select %p59, %s60, %s61
      %p65 = pneg %p59
      %p66 = scmp.eq.s32.totalorder %s24, 1
      %p67 = por %p65, %p66
      %p68 = scmp.ne.s32.totalorder %s60, %s63
      %p69 = scmp.eq.s32.totalorder %s24, 0
      %p70 = por %p68, %p69
      %p71 = scmp.ne.s32.totalorder %s60, %s63
      %p72 = scmp.eq.s32.totalorder %s29, 1
      %p73 = por %p71, %p72
      %p74 = scmp.ne.s32.totalorder %s63, %s64
      %p75 = scmp.eq.s32.totalorder %s29, 0
      %p76 = por %p74, %p75
      %p77 = scmp.ne.s32.totalorder %s63, %s64
      %p78 = scmp.eq.s32.totalorder %s30, 1
      %p79 = por %p77, %p78
      %p81 = scmp.ne.s32.totalorder %s64, %s80
      %p82 = scmp.eq.s32.totalorder %s30, 0
      %p83 = por %p81, %p82
      %s85 = sadd.s32 %s84, 1
      %p88 = scmp.eq.s32.totalorder %s24, 1
      %p89 = scmp.ne.s32.totalorder %s84, %s86
      %p90 = scmp.eq.s32.totalorder %s24, 0
      %p91 = por %p89, %p90
      %p92 = scmp.ne.s32.totalorder %s84, %s86
      %p93 = scmp.eq.s32.totalorder %s29, 1
      %p94 = por %p92, %p93
      %p95 = scmp.ne.s32.totalorder %s86, %s87
      %p96 = scmp.eq.s32.totalorder %s29, 0
      %p97 = por %p95, %p96
      %p98 = scmp.ne.s32.totalorder %s86, %s87
      %p99 = scmp.eq.s32.totalorder %s30, 1
      %p100 = por %p98, %p99
      %p102 = scmp.ne.s32.totalorder %s87, %s101
      %p103 = scmp.eq.s32.totalorder %s30, 0
      %p104 = por %p102, %p103
      %s106 = sadd.s32 %s105, 1
      %p109 = scmp.eq.s32.totalorder %s24, 1
      %p110 = scmp.ne.s32.totalorder %s105, %s107
      %p111 = scmp.eq.s32.totalorder %s24, 0
      %p112 = por %p110, %p111
      %p113 = scmp.ne.s32.totalorder %s105, %s107
      %p114 = scmp.eq.s32.totalorder %s29, 1
      %p115 = por %p113, %p114
      %p116 = scmp.ne.s32.totalorder %s107, %s108
      %p117 = scmp.eq.s32.totalorder %s29, 0
      %p118 = por %p116, %p117
      %p119 = scmp.ne.s32.totalorder %s107, %s108
      %p120 = scmp.eq.s32.totalorder %s30, 1
      %p121 = por %p119, %p120
      %p123 = scmp.ne.s32.totalorder %s108, %s122
      %p124 = scmp.eq.s32.totalorder %s30, 0
      %p125 = por %p123, %p124
      %s126 = ssub.s32 %s24, %s31
      %p127 = scmp.eq.s32.totalorder %s126, 0
      %s129 = sadd.s32 %s128, 1
      %s130 = scalar_select %p127, %s128, %s129
      %p133 = pneg %p127
      %p134 = scmp.eq.s32.totalorder %s24, 1
      %p135 = por %p133, %p134
      %p136 = scmp.ne.s32.totalorder %s128, %s131
      %p137 = scmp.eq.s32.totalorder %s24, 0
      %p138 = por %p136, %p137
      %p139 = scmp.ne.s32.totalorder %s128, %s131
      %p140 = scmp.eq.s32.totalorder %s29, 1
      %p141 = por %p139, %p140
      %p142 = scmp.ne.s32.totalorder %s131, %s132
      %p143 = scmp.eq.s32.totalorder %s29, 0
      %p144 = por %p142, %p143
      %p145 = scmp.ne.s32.totalorder %s131, %s132
      %p146 = scmp.eq.s32.totalorder %s30, 1
      %p147 = por %p145, %p146
      %p149 = scmp.ne.s32.totalorder %s132, %s148
      %p150 = scmp.eq.s32.totalorder %s30, 0
      %p151 = por %p149, %p150
      %s152 = ssub.s32 %s24, %s31
      %p153 = scmp.eq.s32.totalorder %s152, 0
      %s155 = sadd.s32 %s154, 1
      %s156 = scalar_select %p153, %s154, %s155
      %p159 = pneg %p153
      %p160 = scmp.eq.s32.totalorder %s24, 1
      %p161 = por %p159, %p160
      %p162 = scmp.ne.s32.totalorder %s154, %s157
      %p163 = scmp.eq.s32.totalorder %s24, 0
      %p164 = por %p162, %p163
      %p165 = scmp.ne.s32.totalorder %s154, %s157
      %p166 = scmp.eq.s32.totalorder %s29, 1
      %p167 = por %p165, %p166
      %p168 = scmp.ne.s32.totalorder %s157, %s158
      %p169 = scmp.eq.s32.totalorder %s29, 0
      %p170 = por %p168, %p169
      %p171 = scmp.ne.s32.totalorder %s157, %s158
      %p172 = scmp.eq.s32.totalorder %s30, 1
      %p173 = por %p171, %p172
      %p175 = scmp.ne.s32.totalorder %s158, %s174
      %p176 = scmp.eq.s32.totalorder %s30, 0
      %p177 = por %p175, %p176
      %p178 = scmp.le.s32.totalorder 1, %s24
      %p179 = scmp.lt.s32.totalorder %s24, 3
      %p180 = pnand %p178, %p179
      %p181 = pneg %p180
      // Predicated region
      $region9: #{tpu_custom_call.1} parent=5 // pred_check
        _
      $region10: #{tpu_custom_call.1} parent=5 // pred_check_branch
        %183 = sbr.rel (%p180) target = $region12
      $region11: #{tpu_custom_call.1} parent=5 // pred_region
        %s184 = ssub.s32 %s24, 1
        // Predicated region
        $region13: #{tpu_custom_call.1} parent=11 // pred_check
          %p185 = pneg %p97
        $region14: #{tpu_custom_call.1} parent=11 // pred_check_branch
          %187 = sbr.rel (%p185) target = $region16
        $region15: #{tpu_custom_call.1} parent=11 // pred_region
          _
        $region16: #{tpu_custom_call.1} parent=11 // pred_fallthru
          _
        // Predicated region
        $region17: #{tpu_custom_call.1} parent=11 // pred_check
          %p188 = pneg %p118
        $region18: #{tpu_custom_call.1} parent=11 // pred_check_branch
          %190 = sbr.rel (%p188) target = $region20
        $region19: #{tpu_custom_call.1} parent=11 // pred_region
          %s192 = ssub.s32 2048, 2048
          %193 = vsyncadd [#allocation6], %s192
          %s194 = sshll.u32 [#allocation7], 4
          %s195 = int_to_ptr.vmem [resolvable:$true] %s194
          %200 = dma.hbm_to_vmem [thread:$0]  %s3, 2048, %s195, [#allocation6], 128, 128, 8
        $region20: #{tpu_custom_call.1} parent=11 // pred_fallthru
          _
      $region12: #{tpu_custom_call.1} parent=5 // pred_fallthru
        _
      %p201 = scmp.lt.s32.totalorder %s24, 2
      // Predicated region
      $region21: #{tpu_custom_call.1} parent=5 // pred_check
        %p202 = pneg %p201
      $region22: #{tpu_custom_call.1} parent=5 // pred_check_branch
        %204 = sbr.rel (%p202) target = $region24
      $region23: #{tpu_custom_call.1} parent=5 // pred_region
        // Predicated region
        $region25: #{tpu_custom_call.1} parent=23 // pred_check
          %p205 = pneg %p44
        $region26: #{tpu_custom_call.1} parent=23 // pred_check_branch
          %207 = sbr.rel (%p205) target = $region28
        $region27: #{tpu_custom_call.1} parent=23 // pred_region
          %s208 = sand.u32 %s34, 1
          %s209 = scalar_lea.sflag [#allocation3], %s208
          %s210 = sand.u32 %s34, 1
          %s211 = smul.addr %s210, 8
          %s212 = scalar_lea.vmem [#allocation2], %s211
          %s214 = ssub.s32 128, 128
          %215 = vsyncadd %s209, %s214
          %s216 = smul.addr %s24, 128
          %s217 = scalar_lea.hbm %s0, %s216
          %s219 = sshll.u32 %s212, 4
          %s220 = int_to_ptr.vmem [resolvable:$true] %s219
          %222 = dma.hbm_to_vmem [thread:$0]  %s217, 128, %s220, %s209
        $region28: #{tpu_custom_call.1} parent=23 // pred_fallthru
          _
        // Predicated region
        $region29: #{tpu_custom_call.1} parent=23 // pred_check
          %p223 = pneg %p70
        $region30: #{tpu_custom_call.1} parent=23 // pred_check_branch
          %225 = sbr.rel (%p223) target = $region32
        $region31: #{tpu_custom_call.1} parent=23 // pred_region
          %s226 = sand.u32 %s24, 1
          %s227 = scalar_lea.sflag [#allocation6], %s226
          %s228 = sand.u32 %s60, 1
          %s229 = smul.addr %s228, 8
          %s230 = scalar_lea.vmem [#allocation5], %s229
          %s232 = ssub.s32 128, 128
          %233 = vsyncadd %s227, %s232
          %s234 = smul.addr %s24, 128
          %s235 = scalar_lea.hbm %s1, %s234
          %s237 = sshll.u32 %s230, 4
          %s238 = int_to_ptr.vmem [resolvable:$true] %s237
          %240 = dma.hbm_to_vmem [thread:$0]  %s235, 128, %s238, %s227
        $region32: #{tpu_custom_call.1} parent=23 // pred_fallthru
          _
      $region24: #{tpu_custom_call.1} parent=5 // pred_fallthru
        _
      %p241 = scmp.le.s32.totalorder 1, %s24
      %p242 = scmp.lt.s32.totalorder %s24, 3
      %p243 = pnand %p241, %p242
      %p244 = pneg %p243
      // Predicated region
      $region33: #{tpu_custom_call.1} parent=5 // pred_check
        _
      $region34: #{tpu_custom_call.1} parent=5 // pred_check_branch
        %246 = sbr.rel (%p243) target = $region36
      $region35: #{tpu_custom_call.1} parent=5 // pred_region
        %s247 = ssub.s32 %s24, 1
        %s248 = sand.u32 %s37, 1
        %s249 = scalar_lea.sflag [#allocation3], %s248
        %s250 = sand.u32 %s37, 1
        %s251 = smul.addr %s250, 8
        %s252 = scalar_lea.vmem [#allocation2], %s251
        // Predicated region
        $region37: #{tpu_custom_call.1} parent=35 // pred_check
          %p253 = pneg %p50
        $region38: #{tpu_custom_call.1} parent=35 // pred_check_branch
          %255 = sbr.rel (%p253) target = $region40
        $region39: #{tpu_custom_call.1} parent=35 // pred_region
          %256 = dma.done %s249, 128
        $region40: #{tpu_custom_call.1} parent=35 // pred_fallthru
          _
        %s257 = sand.u32 %s29, 1
        %s258 = scalar_lea.sflag [#allocation6], %s257
        %s259 = sand.u32 %s63, 1
        %s260 = smul.addr %s259, 8
        %s261 = scalar_lea.vmem [#allocation5], %s260
        // Predicated region
        $region41: #{tpu_custom_call.1} parent=35 // pred_check
          %p262 = pneg %p76
        $region42: #{tpu_custom_call.1} parent=35 // pred_check_branch
          %264 = sbr.rel (%p262) target = $region44
        $region43: #{tpu_custom_call.1} parent=35 // pred_region
          %265 = dma.done %s258, 128
        $region44: #{tpu_custom_call.1} parent=35 // pred_fallthru
          _
        // Predicated region
        $region45: #{tpu_custom_call.1} parent=35 // pred_check
          %p266 = pneg %p118
        $region46: #{tpu_custom_call.1} parent=35 // pred_check_branch
          %268 = sbr.rel (%p266) target = $region48
        $region47: #{tpu_custom_call.1} parent=35 // pred_region
          %269 = dma.done [#allocation6], 2048
        $region48: #{tpu_custom_call.1} parent=35 // pred_fallthru
          _
        %s270 = sand.u32 %s37, 1
        %s271 = scalar_lea.sflag [#allocation3], %s270
        %s272 = sand.u32 %s37, 1
        %s273 = smul.addr %s272, 8
        %s274 = scalar_lea.vmem [#allocation2], %s273
        %p275 = pneg %p50
        %p276 = pneg %p47
        %s277 = sand.u32 %s29, 1
        %s278 = scalar_lea.sflag [#allocation6], %s277
        %s279 = sand.u32 %s63, 1
        %s280 = smul.addr %s279, 8
        %s281 = scalar_lea.vmem [#allocation5], %s280
        %p282 = pneg %p76
        %p283 = pneg %p73
        %p284 = pneg %p97
        %p285 = pneg %p94
        %p286 = pneg %p118
        %p287 = pneg %p115
        %p288 = pneg %p144
        %p289 = pneg %p141
        %s290 = sand.u32 %s131, 1
        %s291 = scalar_lea.sflag [#allocation4], %s290
        %s292 = sand.u32 %s131, 1
        %s293 = smul.addr %s292, 8
        %s294 = scalar_lea.vmem [#allocation8], %s293
        %p295 = pneg %p170
        %p296 = pneg %p167
        %s297 = sand.u32 %s157, 1
        %s298 = scalar_lea.sflag [#allocation10], %s297
        %s299 = sand.u32 %s157, 1
        %s300 = smul.addr %s299, 8
        %s301 = scalar_lea.vmem [#allocation9], %s300
        %v302 = vld [vmem:[%s252] sm:$0xff]
        %v303 = vld [vmem:[%s261] sm:$0xff]
        %v304 = vld [vmem:[#allocation7] sm:$0xff]
        %v305 = vld [vmem:[#allocation7 + $0x8] sm:$0xff]
        %v306 = vld [vmem:[#allocation7 + $0x10] sm:$0xff]
        %v307 = vld [vmem:[#allocation7 + $0x18] sm:$0xff]
        %v308 = vld [vmem:[#allocation7 + $0x20] sm:$0xff]
        %v309 = vld [vmem:[#allocation7 + $0x28] sm:$0xff]
        %v310 = vld [vmem:[#allocation7 + $0x30] sm:$0xff]
        %v311 = vld [vmem:[#allocation7 + $0x38] sm:$0xff]
        %v312 = vld [vmem:[#allocation7 + $0x40] sm:$0xff]
        %v313 = vld [vmem:[#allocation7 + $0x48] sm:$0xff]
        %v314 = vld [vmem:[#allocation7 + $0x50] sm:$0xff]
        %v315 = vld [vmem:[#allocation7 + $0x58] sm:$0xff]
        %v316 = vld [vmem:[#allocation7 + $0x60] sm:$0xff]
        %v317 = vld [vmem:[#allocation7 + $0x68] sm:$0xff]
        %v318 = vld [vmem:[#allocation7 + $0x70] sm:$0xff]
        %v319 = vld [vmem:[#allocation7 + $0x78] sm:$0xff]
        %v320 = vmul.f32 %v302, %v302
        %321 = vmatprep.subr.mxu0 0.0
        %v322 = vand.u32 %v304, 4294901760
        %323 = vmatpush1.msra.mxu0 %v322
        %324 = vmatprep.subr.mxu0 0.0
        %v325 = vand.u32 %v305, 4294901760
        %326 = vmatpush1.msra.mxu0 %v325
        %327 = vmatprep.subr.mxu0 0.0
        %v328 = vand.u32 %v306, 4294901760
        %329 = vmatpush1.msra.mxu0 %v328
        %330 = vmatprep.subr.mxu0 0.0
        %v331 = vand.u32 %v307, 4294901760
        %332 = vmatpush1.msra.mxu0 %v331
        %333 = vmatprep.subr.mxu0 0.0
        %v334 = vand.u32 %v308, 4294901760
        %335 = vmatpush1.msra.mxu0 %v334
        %336 = vmatprep.subr.mxu0 0.0
        %v337 = vand.u32 %v309, 4294901760
        %338 = vmatpush1.msra.mxu0 %v337
        %339 = vmatprep.subr.mxu0 0.0
        %v340 = vand.u32 %v310, 4294901760
        %341 = vmatpush1.msra.mxu0 %v340
        %342 = vmatprep.subr.mxu0 0.0
        %v343 = vand.u32 %v311, 4294901760
        %344 = vmatpush1.msra.mxu0 %v343
        %345 = vmatprep.subr.mxu0 0.0
        %v346 = vand.u32 %v312, 4294901760
        %347 = vmatpush1.msra.mxu0 %v346
        %348 = vmatprep.subr.mxu0 0.0
        %v349 = vand.u32 %v313, 4294901760
        %350 = vmatpush1.msra.mxu0 %v349
        %351 = vmatprep.subr.mxu0 0.0
        %v352 = vand.u32 %v314, 4294901760
        %353 = vmatpush1.msra.mxu0 %v352
        %354 = vmatprep.subr.mxu0 0.0
        %v355 = vand.u32 %v315, 4294901760
        %356 = vmatpush1.msra.mxu0 %v355
        %357 = vmatprep.subr.mxu0 0.0
        %v358 = vand.u32 %v316, 4294901760
        %359 = vmatpush1.msra.mxu0 %v358
        %360 = vmatprep.subr.mxu0 0.0
        %v361 = vand.u32 %v317, 4294901760
        %362 = vmatpush1.msra.mxu0 %v361
        %363 = vmatprep.subr.mxu0 0.0
        %v364 = vand.u32 %v318, 4294901760
        %365 = vmatpush1.msra.mxu0 %v364
        %366 = vmatprep.subr.mxu0 0.0
        %v367 = vand.u32 %v319, 4294901760
        %368 = vmatpush1.msra.mxu0 %v367
        %369 = vmatprep.subr.mxu0 0.0
        %370 = vmatpush1.msra.mxu0 0.0
        %371 = vmatprep.subr.mxu0 0.0
        %372 = vmatpush1.msra.mxu0 0.0
        %373 = vmatprep.subr.mxu0 0.0
        %374 = vmatpush1.msra.mxu0 0.0
        %375 = vmatprep.subr.mxu0 0.0
        %376 = vmatpush1.msra.mxu0 0.0
        %377 = vmatprep.subr.mxu0 0.0
        %378 = vmatpush1.msra.mxu0 0.0
        %379 = vmatprep.subr.mxu0 0.0
        %380 = vmatpush1.msra.mxu0 0.0
        %381 = vmatprep.subr.mxu0 0.0
        %382 = vmatpush1.msra.mxu0 0.0
        %383 = vmatprep.subr.mxu0 0.0
        %384 = vmatpush1.msra.mxu0 0.0
        %385 = vmatprep.subr.mxu0 0.0
        %386 = vmatpush1.msra.mxu0 0.0
        %387 = vmatprep.subr.mxu0 0.0
        %388 = vmatpush1.msra.mxu0 0.0
        %389 = vmatprep.subr.mxu0 0.0
        %390 = vmatpush1.msra.mxu0 0.0
        %391 = vmatprep.subr.mxu0 0.0
        %392 = vmatpush1.msra.mxu0 0.0
        %393 = vmatprep.subr.mxu0 0.0
        %394 = vmatpush1.msra.mxu0 0.0
        %395 = vmatprep.subr.mxu0 0.0
        %396 = vmatpush1.msra.mxu0 0.0
        %397 = vmatprep.subr.mxu0 0.0
        %398 = vmatpush1.msra.mxu0 0.0
        %399 = vmatprep.subr.mxu0 0.0
        %400 = vmatpush1.msra.mxu0 0.0
        %401 = vmatprep.mubr.f32.mxu0 0.0
        %v402 = vand.u32 %v320, 4294901760
        %v403 = vsub.f32 %v320, %v402
        %v404 = vand.u32 %v403, 4294901760
        %v405 = vsub.f32 %v403, %v404
        %v406 = vand.u32 %v405, 4294901760
        %407 = vmatmul.mubr.f32.gmra.mrb[0].mxu0 %v406
        %v408 = vpop.f32.mrb[0].mxu0
        %v409 = vadd.f32 0.0, %v408
        %v410 = vpop.f32.mrb[0].mxu0
        %411 = vdwg.mxu0
        %412 = vmatprep.subr.mxu0 0.0
        %v413 = vand.u32 %v304, 4294901760
        %v414 = vsub.f32 %v304, %v413
        %v415 = vand.u32 %v414, 4294901760
        %v416 = vsub.f32 %v414, %v415
        %v417 = vand.u32 %v416, 4294901760
        %418 = vmatpush1.msra.mxu0 %v417
        %419 = vmatprep.subr.mxu0 0.0
        %v420 = vand.u32 %v305, 4294901760
        %v421 = vsub.f32 %v305, %v420
        %v422 = vand.u32 %v421, 4294901760
        %v423 = vsub.f32 %v421, %v422
        %v424 = vand.u32 %v423, 4294901760
        %425 = vmatpush1.msra.mxu0 %v424
        %426 = vmatprep.subr.mxu0 0.0
        %v427 = vand.u32 %v306, 4294901760
        %v428 = vsub.f32 %v306, %v427
        %v429 = vand.u32 %v428, 4294901760
        %v430 = vsub.f32 %v428, %v429
        %v431 = vand.u32 %v430, 4294901760
        %432 = vmatpush1.msra.mxu0 %v431
        %433 = vmatprep.subr.mxu0 0.0
        %v434 = vand.u32 %v307, 4294901760
        %v435 = vsub.f32 %v307, %v434
        %v436 = vand.u32 %v435, 4294901760
        %v437 = vsub.f32 %v435, %v436
        %v438 = vand.u32 %v437, 4294901760
        %439 = vmatpush1.msra.mxu0 %v438
        %440 = vmatprep.subr.mxu0 0.0
        %v441 = vand.u32 %v308, 4294901760
        %v442 = vsub.f32 %v308, %v441
        %v443 = vand.u32 %v442, 4294901760
        %v444 = vsub.f32 %v442, %v443
        %v445 = vand.u32 %v444, 4294901760
        %446 = vmatpush1.msra.mxu0 %v445
        %447 = vmatprep.subr.mxu0 0.0
        %v448 = vand.u32 %v309, 4294901760
        %v449 = vsub.f32 %v309, %v448
        %v450 = vand.u32 %v449, 4294901760
        %v451 = vsub.f32 %v449, %v450
        %v452 = vand.u32 %v451, 4294901760
        %453 = vmatpush1.msra.mxu0 %v452
        %454 = vmatprep.subr.mxu0 0.0
        %v455 = vand.u32 %v310, 4294901760
        %v456 = vsub.f32 %v310, %v455
        %v457 = vand.u32 %v456, 4294901760
        %v458 = vsub.f32 %v456, %v457
        %v459 = vand.u32 %v458, 4294901760
        %460 = vmatpush1.msra.mxu0 %v459
        %461 = vmatprep.subr.mxu0 0.0
        %v462 = vand.u32 %v311, 4294901760
        %v463 = vsub.f32 %v311, %v462
        %v464 = vand.u32 %v463, 4294901760
        %v465 = vsub.f32 %v463, %v464
        %v466 = vand.u32 %v465, 4294901760
        %467 = vmatpush1.msra.mxu0 %v466
        %468 = vmatprep.subr.mxu0 0.0
        %v469 = vand.u32 %v312, 4294901760
        %v470 = vsub.f32 %v312, %v469
        %v471 = vand.u32 %v470, 4294901760
        %v472 = vsub.f32 %v470, %v471
        %v473 = vand.u32 %v472, 4294901760
        %474 = vmatpush1.msra.mxu0 %v473
        %475 = vmatprep.subr.mxu0 0.0
        %v476 = vand.u32 %v313, 4294901760
        %v477 = vsub.f32 %v313, %v476
        %v478 = vand.u32 %v477, 4294901760
        %v479 = vsub.f32 %v477, %v478
        %v480 = vand.u32 %v479, 4294901760
        %481 = vmatpush1.msra.mxu0 %v480
        %482 = vmatprep.subr.mxu0 0.0
        %v483 = vand.u32 %v314, 4294901760
        %v484 = vsub.f32 %v314, %v483
        %v485 = vand.u32 %v484, 4294901760
        %v486 = vsub.f32 %v484, %v485
        %v487 = vand.u32 %v486, 4294901760
        %488 = vmatpush1.msra.mxu0 %v487
        %489 = vmatprep.subr.mxu0 0.0
        %v490 = vand.u32 %v315, 4294901760
        %v491 = vsub.f32 %v315, %v490
        %v492 = vand.u32 %v491, 4294901760
        %v493 = vsub.f32 %v491, %v492
        %v494 = vand.u32 %v493, 4294901760
        %495 = vmatpush1.msra.mxu0 %v494
        %496 = vmatprep.subr.mxu0 0.0
        %v497 = vand.u32 %v316, 4294901760
        %v498 = vsub.f32 %v316, %v497
        %v499 = vand.u32 %v498, 4294901760
        %v500 = vsub.f32 %v498, %v499
        %v501 = vand.u32 %v500, 4294901760
        %502 = vmatpush1.msra.mxu0 %v501
        %503 = vmatprep.subr.mxu0 0.0
        %v504 = vand.u32 %v317, 4294901760
        %v505 = vsub.f32 %v317, %v504
        %v506 = vand.u32 %v505, 4294901760
        %v507 = vsub.f32 %v505, %v506
        %v508 = vand.u32 %v507, 4294901760
        %509 = vmatpush1.msra.mxu0 %v508
        %510 = vmatprep.subr.mxu0 0.0
        %v511 = vand.u32 %v318, 4294901760
        %v512 = vsub.f32 %v318, %v511
        %v513 = vand.u32 %v512, 4294901760
        %v514 = vsub.f32 %v512, %v513
        %v515 = vand.u32 %v514, 4294901760
        %516 = vmatpush1.msra.mxu0 %v515
        %517 = vmatprep.subr.mxu0 0.0
        %v518 = vand.u32 %v319, 4294901760
        %v519 = vsub.f32 %v319, %v518
        %v520 = vand.u32 %v519, 4294901760
        %v521 = vsub.f32 %v519, %v520
        %v522 = vand.u32 %v521, 4294901760
        %523 = vmatpush1.msra.mxu0 %v522
        %524 = vmatprep.subr.mxu0 0.0
        %525 = vmatpush1.msra.mxu0 0.0
        %526 = vmatprep.subr.mxu0 0.0
        %527 = vmatpush1.msra.mxu0 0.0
        %528 = vmatprep.subr.mxu0 0.0
        %529 = vmatpush1.msra.mxu0 0.0
        %530 = vmatprep.subr.mxu0 0.0
        %531 = vmatpush1.msra.mxu0 0.0
        %532 = vmatprep.subr.mxu0 0.0
        %533 = vmatpush1.msra.mxu0 0.0
        %534 = vmatprep.subr.mxu0 0.0
        %535 = vmatpush1.msra.mxu0 0.0
        %536 = vmatprep.subr.mxu0 0.0
        %537 = vmatpush1.msra.mxu0 0.0
        %538 = vmatprep.subr.mxu0 0.0
        %539 = vmatpush1.msra.mxu0 0.0
        %540 = vmatprep.subr.mxu0 0.0
        %541 = vmatpush1.msra.mxu0 0.0
        %542 = vmatprep.subr.mxu0 0.0
        %543 = vmatpush1.msra.mxu0 0.0
        %544 = vmatprep.subr.mxu0 0.0
        %545 = vmatpush1.msra.mxu0 0.0
        %546 = vmatprep.subr.mxu0 0.0
        %547 = vmatpush1.msra.mxu0 0.0
        %548 = vmatprep.subr.mxu0 0.0
        %549 = vmatpush1.msra.mxu0 0.0
        %550 = vmatprep.subr.mxu0 0.0
        %551 = vmatpush1.msra.mxu0 0.0
        %552 = vmatprep.subr.mxu0 0.0
        %553 = vmatpush1.msra.mxu0 0.0
        %554 = vmatprep.subr.mxu0 0.0
        %555 = vmatpush1.msra.mxu0 0.0
        %556 = vmatprep.mubr.f32.mxu0 0.0
        %v557 = vand.u32 %v320, 4294901760
        %558 = vmatmul.mubr.f32.gmra.mrb[0].mxu0 %v557
        %v559 = vpop.f32.mrb[0].mxu0
        %v560 = vadd.f32 %v409, %v559
        %v561 = vpop.f32.mrb[0].mxu0
        %562 = vdwg.mxu0
        %563 = vmatprep.subr.mxu0 0.0
        %v564 = vand.u32 %v304, 4294901760
        %v565 = vsub.f32 %v304, %v564
        %566 = vmatpush1.msra.mxu0 %v565
        %567 = vmatprep.subr.mxu0 0.0
        %v568 = vand.u32 %v305, 4294901760
        %v569 = vsub.f32 %v305, %v568
        %570 = vmatpush1.msra.mxu0 %v569
        %571 = vmatprep.subr.mxu0 0.0
        %v572 = vand.u32 %v306, 4294901760
        %v573 = vsub.f32 %v306, %v572
        %574 = vmatpush1.msra.mxu0 %v573
        %575 = vmatprep.subr.mxu0 0.0
        %v576 = vand.u32 %v307, 4294901760
        %v577 = vsub.f32 %v307, %v576
        %578 = vmatpush1.msra.mxu0 %v577
        %579 = vmatprep.subr.mxu0 0.0
        %v580 = vand.u32 %v308, 4294901760
        %v581 = vsub.f32 %v308, %v580
        %582 = vmatpush1.msra.mxu0 %v581
        %583 = vmatprep.subr.mxu0 0.0
        %v584 = vand.u32 %v309, 4294901760
        %v585 = vsub.f32 %v309, %v584
        %586 = vmatpush1.msra.mxu0 %v585
        %587 = vmatprep.subr.mxu0 0.0
        %v588 = vand.u32 %v310, 4294901760
        %v589 = vsub.f32 %v310, %v588
        %590 = vmatpush1.msra.mxu0 %v589
        %591 = vmatprep.subr.mxu0 0.0
        %v592 = vand.u32 %v311, 4294901760
        %v593 = vsub.f32 %v311, %v592
        %594 = vmatpush1.msra.mxu0 %v593
        %595 = vmatprep.subr.mxu0 0.0
        %v596 = vand.u32 %v312, 4294901760
        %v597 = vsub.f32 %v312, %v596
        %598 = vmatpush1.msra.mxu0 %v597
        %599 = vmatprep.subr.mxu0 0.0
        %v600 = vand.u32 %v313, 4294901760
        %v601 = vsub.f32 %v313, %v600
        %602 = vmatpush1.msra.mxu0 %v601
        %603 = vmatprep.subr.mxu0 0.0
        %v604 = vand.u32 %v314, 4294901760
        %v605 = vsub.f32 %v314, %v604
        %606 = vmatpush1.msra.mxu0 %v605
        %607 = vmatprep.subr.mxu0 0.0
        %v608 = vand.u32 %v315, 4294901760
        %v609 = vsub.f32 %v315, %v608
        %610 = vmatpush1.msra.mxu0 %v609
        %611 = vmatprep.subr.mxu0 0.0
        %v612 = vand.u32 %v316, 4294901760
        %v613 = vsub.f32 %v316, %v612
        %614 = vmatpush1.msra.mxu0 %v613
        %615 = vmatprep.subr.mxu0 0.0
        %v616 = vand.u32 %v317, 4294901760
        %v617 = vsub.f32 %v317, %v616
        %618 = vmatpush1.msra.mxu0 %v617
        %619 = vmatprep.subr.mxu0 0.0
        %v620 = vand.u32 %v318, 4294901760
        %v621 = vsub.f32 %v318, %v620
        %622 = vmatpush1.msra.mxu0 %v621
        %623 = vmatprep.subr.mxu0 0.0
        %v624 = vand.u32 %v319, 4294901760
        %v625 = vsub.f32 %v319, %v624
        %626 = vmatpush1.msra.mxu0 %v625
        %627 = vmatprep.subr.mxu0 0.0
        %628 = vmatpush1.msra.mxu0 0.0
        %629 = vmatprep.subr.mxu0 0.0
        %630 = vmatpush1.msra.mxu0 0.0
        %631 = vmatprep.subr.mxu0 0.0
        %632 = vmatpush1.msra.mxu0 0.0
        %633 = vmatprep.subr.mxu0 0.0
        %634 = vmatpush1.msra.mxu0 0.0
        %635 = vmatprep.subr.mxu0 0.0
        %636 = vmatpush1.msra.mxu0 0.0
        %637 = vmatprep.subr.mxu0 0.0
        %638 = vmatpush1.msra.mxu0 0.0
        %639 = vmatprep.subr.mxu0 0.0
        %640 = vmatpush1.msra.mxu0 0.0
        %641 = vmatprep.subr.mxu0 0.0
        %642 = vmatpush1.msra.mxu0 0.0
        %643 = vmatprep.subr.mxu0 0.0
        %644 = vmatpush1.msra.mxu0 0.0
        %645 = vmatprep.subr.mxu0 0.0
        %646 = vmatpush1.msra.mxu0 0.0
        %647 = vmatprep.subr.mxu0 0.0
        %648 = vmatpush1.msra.mxu0 0.0
        %649 = vmatprep.subr.mxu0 0.0
        %650 = vmatpush1.msra.mxu0 0.0
        %651 = vmatprep.subr.mxu0 0.0
        %652 = vmatpush1.msra.mxu0 0.0
        %653 = vmatprep.subr.mxu0 0.0
        %654 = vmatpush1.msra.mxu0 0.0
        %655 = vmatprep.subr.mxu0 0.0
        %656 = vmatpush1.msra.mxu0 0.0
        %657 = vmatprep.subr.mxu0 0.0
        %658 = vmatpush1.msra.mxu0 0.0
        %659 = vmatprep.mubr.f32.mxu0 0.0
        %v660 = vand.u32 %v320, 4294901760
        %v661 = vsub.f32 %v320, %v660
        %662 = vmatmul.mubr.f32.gmra.mrb[0].mxu0 %v661
        %v663 = vpop.f32.mrb[0].mxu0
        %v664 = vadd.f32 %v560, %v663
        %v665 = vpop.f32.mrb[0].mxu0
        %666 = vdwg.mxu0
        %667 = vmatprep.subr.mxu0 0.0
        %v668 = vand.u32 %v304, 4294901760
        %669 = vmatpush1.msra.mxu0 %v668
        %670 = vmatprep.subr.mxu0 0.0
        %v671 = vand.u32 %v305, 4294901760
        %672 = vmatpush1.msra.mxu0 %v671
        %673 = vmatprep.subr.mxu0 0.0
        %v674 = vand.u32 %v306, 4294901760
        %675 = vmatpush1.msra.mxu0 %v674
        %676 = vmatprep.subr.mxu0 0.0
        %v677 = vand.u32 %v307, 4294901760
        %678 = vmatpush1.msra.mxu0 %v677
        %679 = vmatprep.subr.mxu0 0.0
        %v680 = vand.u32 %v308, 4294901760
        %681 = vmatpush1.msra.mxu0 %v680
        %682 = vmatprep.subr.mxu0 0.0
        %v683 = vand.u32 %v309, 4294901760
        %684 = vmatpush1.msra.mxu0 %v683
        %685 = vmatprep.subr.mxu0 0.0
        %v686 = vand.u32 %v310, 4294901760
        %687 = vmatpush1.msra.mxu0 %v686
        %688 = vmatprep.subr.mxu0 0.0
        %v689 = vand.u32 %v311, 4294901760
        %690 = vmatpush1.msra.mxu0 %v689
        %691 = vmatprep.subr.mxu0 0.0
        %v692 = vand.u32 %v312, 4294901760
        %693 = vmatpush1.msra.mxu0 %v692
        %694 = vmatprep.subr.mxu0 0.0
        %v695 = vand.u32 %v313, 4294901760
        %696 = vmatpush1.msra.mxu0 %v695
        %697 = vmatprep.subr.mxu0 0.0
        %v698 = vand.u32 %v314, 4294901760
        %699 = vmatpush1.msra.mxu0 %v698
        %700 = vmatprep.subr.mxu0 0.0
        %v701 = vand.u32 %v315, 4294901760
        %702 = vmatpush1.msra.mxu0 %v701
        %703 = vmatprep.subr.mxu0 0.0
        %v704 = vand.u32 %v316, 4294901760
        %705 = vmatpush1.msra.mxu0 %v704
        %706 = vmatprep.subr.mxu0 0.0
        %v707 = vand.u32 %v317, 4294901760
        %708 = vmatpush1.msra.mxu0 %v707
        %709 = vmatprep.subr.mxu0 0.0
        %v710 = vand.u32 %v318, 4294901760
        %711 = vmatpush1.msra.mxu0 %v710
        %712 = vmatprep.subr.mxu0 0.0
        %v713 = vand.u32 %v319, 4294901760
        %714 = vmatpush1.msra.mxu0 %v713
        %715 = vmatprep.subr.mxu0 0.0
        %716 = vmatpush1.msra.mxu0 0.0
        %717 = vmatprep.subr.mxu0 0.0
        %718 = vmatpush1.msra.mxu0 0.0
        %719 = vmatprep.subr.mxu0 0.0
        %720 = vmatpush1.msra.mxu0 0.0
        %721 = vmatprep.subr.mxu0 0.0
        %722 = vmatpush1.msra.mxu0 0.0
        %723 = vmatprep.subr.mxu0 0.0
        %724 = vmatpush1.msra.mxu0 0.0
        %725 = vmatprep.subr.mxu0 0.0
        %726 = vmatpush1.msra.mxu0 0.0
        %727 = vmatprep.subr.mxu0 0.0
        %728 = vmatpush1.msra.mxu0 0.0
        %729 = vmatprep.subr.mxu0 0.0
        %730 = vmatpush1.msra.mxu0 0.0
        %731 = vmatprep.subr.mxu0 0.0
        %732 = vmatpush1.msra.mxu0 0.0
        %733 = vmatprep.subr.mxu0 0.0
        %734 = vmatpush1.msra.mxu0 0.0
        %735 = vmatprep.subr.mxu0 0.0
        %736 = vmatpush1.msra.mxu0 0.0
        %737 = vmatprep.subr.mxu0 0.0
        %738 = vmatpush1.msra.mxu0 0.0
        %739 = vmatprep.subr.mxu0 0.0
        %740 = vmatpush1.msra.mxu0 0.0
        %741 = vmatprep.subr.mxu0 0.0
        %742 = vmatpush1.msra.mxu0 0.0
        %743 = vmatprep.subr.mxu0 0.0
        %744 = vmatpush1.msra.mxu0 0.0
        %745 = vmatprep.subr.mxu0 0.0
        %746 = vmatpush1.msra.mxu0 0.0
        %747 = vmatprep.mubr.f32.mxu0 0.0
        %v748 = vand.u32 %v320, 4294901760
        %v749 = vsub.f32 %v320, %v748
        %v750 = vand.u32 %v749, 4294901760
        %751 = vmatmul.mubr.f32.gmra.mrb[0].mxu0 %v750
        %v752 = vpop.f32.mrb[0].mxu0
        %v753 = vadd.f32 %v664, %v752
        %v754 = vpop.f32.mrb[0].mxu0
        %755 = vdwg.mxu0
        %756 = vmatprep.subr.mxu0 0.0
        %v757 = vand.u32 %v304, 4294901760
        %v758 = vsub.f32 %v304, %v757
        %v759 = vand.u32 %v758, 4294901760
        %760 = vmatpush1.msra.mxu0 %v759
        %761 = vmatprep.subr.mxu0 0.0
        %v762 = vand.u32 %v305, 4294901760
        %v763 = vsub.f32 %v305, %v762
        %v764 = vand.u32 %v763, 4294901760
        %765 = vmatpush1.msra.mxu0 %v764
        %766 = vmatprep.subr.mxu0 0.0
        %v767 = vand.u32 %v306, 4294901760
        %v768 = vsub.f32 %v306, %v767
        %v769 = vand.u32 %v768, 4294901760
        %770 = vmatpush1.msra.mxu0 %v769
        %771 = vmatprep.subr.mxu0 0.0
        %v772 = vand.u32 %v307, 4294901760
        %v773 = vsub.f32 %v307, %v772
        %v774 = vand.u32 %v773, 4294901760
        %775 = vmatpush1.msra.mxu0 %v774
        %776 = vmatprep.subr.mxu0 0.0
        %v777 = vand.u32 %v308, 4294901760
        %v778 = vsub.f32 %v308, %v777
        %v779 = vand.u32 %v778, 4294901760
        %780 = vmatpush1.msra.mxu0 %v779
        %781 = vmatprep.subr.mxu0 0.0
        %v782 = vand.u32 %v309, 4294901760
        %v783 = vsub.f32 %v309, %v782
        %v784 = vand.u32 %v783, 4294901760
        %785 = vmatpush1.msra.mxu0 %v784
        %786 = vmatprep.subr.mxu0 0.0
        %v787 = vand.u32 %v310, 4294901760
        %v788 = vsub.f32 %v310, %v787
        %v789 = vand.u32 %v788, 4294901760
        %790 = vmatpush1.msra.mxu0 %v789
        %791 = vmatprep.subr.mxu0 0.0
        %v792 = vand.u32 %v311, 4294901760
        %v793 = vsub.f32 %v311, %v792
        %v794 = vand.u32 %v793, 4294901760
        %795 = vmatpush1.msra.mxu0 %v794
        %796 = vmatprep.subr.mxu0 0.0
        %v797 = vand.u32 %v312, 4294901760
        %v798 = vsub.f32 %v312, %v797
        %v799 = vand.u32 %v798, 4294901760
        %800 = vmatpush1.msra.mxu0 %v799
        %801 = vmatprep.subr.mxu0 0.0
        %v802 = vand.u32 %v313, 4294901760
        %v803 = vsub.f32 %v313, %v802
        %v804 = vand.u32 %v803, 4294901760
        %805 = vmatpush1.msra.mxu0 %v804
        %806 = vmatprep.subr.mxu0 0.0
        %v807 = vand.u32 %v314, 4294901760
        %v808 = vsub.f32 %v314, %v807
        %v809 = vand.u32 %v808, 4294901760
        %810 = vmatpush1.msra.mxu0 %v809
        %811 = vmatprep.subr.mxu0 0.0
        %v812 = vand.u32 %v315, 4294901760
        %v813 = vsub.f32 %v315, %v812
        %v814 = vand.u32 %v813, 4294901760
        %815 = vmatpush1.msra.mxu0 %v814
        %816 = vmatprep.subr.mxu0 0.0
        %v817 = vand.u32 %v316, 4294901760
        %v818 = vsub.f32 %v316, %v817
        %v819 = vand.u32 %v818, 4294901760
        %820 = vmatpush1.msra.mxu0 %v819
        %821 = vmatprep.subr.mxu0 0.0
        %v822 = vand.u32 %v317, 4294901760
        %v823 = vsub.f32 %v317, %v822
        %v824 = vand.u32 %v823, 4294901760
        %825 = vmatpush1.msra.mxu0 %v824
        %826 = vmatprep.subr.mxu0 0.0
        %v827 = vand.u32 %v318, 4294901760
        %v828 = vsub.f32 %v318, %v827
        %v829 = vand.u32 %v828, 4294901760
        %830 = vmatpush1.msra.mxu0 %v829
        %831 = vmatprep.subr.mxu0 0.0
        %v832 = vand.u32 %v319, 4294901760
        %v833 = vsub.f32 %v319, %v832
        %v834 = vand.u32 %v833, 4294901760
        %835 = vmatpush1.msra.mxu0 %v834
        %836 = vmatprep.subr.mxu0 0.0
        %837 = vmatpush1.msra.mxu0 0.0
        %838 = vmatprep.subr.mxu0 0.0
        %839 = vmatpush1.msra.mxu0 0.0
        %840 = vmatprep.subr.mxu0 0.0
        %841 = vmatpush1.msra.mxu0 0.0
        %842 = vmatprep.subr.mxu0 0.0
        %843 = vmatpush1.msra.mxu0 0.0
        %844 = vmatprep.subr.mxu0 0.0
        %845 = vmatpush1.msra.mxu0 0.0
        %846 = vmatprep.subr.mxu0 0.0
        %847 = vmatpush1.msra.mxu0 0.0
        %848 = vmatprep.subr.mxu0 0.0
        %849 = vmatpush1.msra.mxu0 0.0
        %850 = vmatprep.subr.mxu0 0.0
        %851 = vmatpush1.msra.mxu0 0.0
        %852 = vmatprep.subr.mxu0 0.0
        %853 = vmatpush1.msra.mxu0 0.0
        %854 = vmatprep.subr.mxu0 0.0
        %855 = vmatpush1.msra.mxu0 0.0
        %856 = vmatprep.subr.mxu0 0.0
        %857 = vmatpush1.msra.mxu0 0.0
        %858 = vmatprep.subr.mxu0 0.0
        %859 = vmatpush1.msra.mxu0 0.0
        %860 = vmatprep.subr.mxu0 0.0
        %861 = vmatpush1.msra.mxu0 0.0
        %862 = vmatprep.subr.mxu0 0.0
        %863 = vmatpush1.msra.mxu0 0.0
        %864 = vmatprep.subr.mxu0 0.0
        %865 = vmatpush1.msra.mxu0 0.0
        %866 = vmatprep.subr.mxu0 0.0
        %867 = vmatpush1.msra.mxu0 0.0
        %868 = vmatprep.mubr.f32.mxu0 0.0
        %v869 = vand.u32 %v320, 4294901760
        %870 = vmatmul.mubr.f32.gmra.mrb[0].mxu0 %v869
        %v871 = vpop.f32.mrb[0].mxu0
        %v872 = vadd.f32 %v753, %v871
        %v873 = vpop.f32.mrb[0].mxu0
        %874 = vdwg.mxu0
        %875 = vmatprep.subr.mxu0 0.0
        %v876 = vand.u32 %v304, 4294901760
        %877 = vmatpush1.msra.mxu0 %v876
        %878 = vmatprep.subr.mxu0 0.0
        %v879 = vand.u32 %v305, 4294901760
        %880 = vmatpush1.msra.mxu0 %v879
        %881 = vmatprep.subr.mxu0 0.0
        %v882 = vand.u32 %v306, 4294901760
        %883 = vmatpush1.msra.mxu0 %v882
        %884 = vmatprep.subr.mxu0 0.0
        %v885 = vand.u32 %v307, 4294901760
        %886 = vmatpush1.msra.mxu0 %v885
        %887 = vmatprep.subr.mxu0 0.0
        %v888 = vand.u32 %v308, 4294901760
        %889 = vmatpush1.msra.mxu0 %v888
        %890 = vmatprep.subr.mxu0 0.0
        %v891 = vand.u32 %v309, 4294901760
        %892 = vmatpush1.msra.mxu0 %v891
        %893 = vmatprep.subr.mxu0 0.0
        %v894 = vand.u32 %v310, 4294901760
        %895 = vmatpush1.msra.mxu0 %v894
        %896 = vmatprep.subr.mxu0 0.0
        %v897 = vand.u32 %v311, 4294901760
        %898 = vmatpush1.msra.mxu0 %v897
        %899 = vmatprep.subr.mxu0 0.0
        %v900 = vand.u32 %v312, 4294901760
        %901 = vmatpush1.msra.mxu0 %v900
        %902 = vmatprep.subr.mxu0 0.0
        %v903 = vand.u32 %v313, 4294901760
        %904 = vmatpush1.msra.mxu0 %v903
        %905 = vmatprep.subr.mxu0 0.0
        %v906 = vand.u32 %v314, 4294901760
        %907 = vmatpush1.msra.mxu0 %v906
        %908 = vmatprep.subr.mxu0 0.0
        %v909 = vand.u32 %v315, 4294901760
        %910 = vmatpush1.msra.mxu0 %v909
        %911 = vmatprep.subr.mxu0 0.0
        %v912 = vand.u32 %v316, 4294901760
        %913 = vmatpush1.msra.mxu0 %v912
        %914 = vmatprep.subr.mxu0 0.0
        %v915 = vand.u32 %v317, 4294901760
        %916 = vmatpush1.msra.mxu0 %v915
        %917 = vmatprep.subr.mxu0 0.0
        %v918 = vand.u32 %v318, 4294901760
        %919 = vmatpush1.msra.mxu0 %v918
        %920 = vmatprep.subr.mxu0 0.0
        %v921 = vand.u32 %v319, 4294901760
        %922 = vmatpush1.msra.mxu0 %v921
        %923 = vmatprep.subr.mxu0 0.0
        %924 = vmatpush1.msra.mxu0 0.0
        %925 = vmatprep.subr.mxu0 0.0
        %926 = vmatpush1.msra.mxu0 0.0
        %927 = vmatprep.subr.mxu0 0.0
        %928 = vmatpush1.msra.mxu0 0.0
        %929 = vmatprep.subr.mxu0 0.0
        %930 = vmatpush1.msra.mxu0 0.0
        %931 = vmatprep.subr.mxu0 0.0
        %932 = vmatpush1.msra.mxu0 0.0
        %933 = vmatprep.subr.mxu0 0.0
        %934 = vmatpush1.msra.mxu0 0.0
        %935 = vmatprep.subr.mxu0 0.0
        %936 = vmatpush1.msra.mxu0 0.0
        %937 = vmatprep.subr.mxu0 0.0
        %938 = vmatpush1.msra.mxu0 0.0
        %939 = vmatprep.subr.mxu0 0.0
        %940 = vmatpush1.msra.mxu0 0.0
        %941 = vmatprep.subr.mxu0 0.0
        %942 = vmatpush1.msra.mxu0 0.0
        %943 = vmatprep.subr.mxu0 0.0
        %944 = vmatpush1.msra.mxu0 0.0
        %945 = vmatprep.subr.mxu0 0.0
        %946 = vmatpush1.msra.mxu0 0.0
        %947 = vmatprep.subr.mxu0 0.0
        %948 = vmatpush1.msra.mxu0 0.0
        %949 = vmatprep.subr.mxu0 0.0
        %950 = vmatpush1.msra.mxu0 0.0
        %951 = vmatprep.subr.mxu0 0.0
        %952 = vmatpush1.msra.mxu0 0.0
        %953 = vmatprep.subr.mxu0 0.0
        %954 = vmatpush1.msra.mxu0 0.0
        %955 = vmatprep.mubr.f32.mxu0 0.0
        %v956 = vand.u32 %v320, 4294901760
        %957 = vmatmul.mubr.f32.gmra.mrb[0].mxu0 %v956
        %v958 = vpop.f32.mrb[0].mxu0
        %v959 = vadd.f32 %v872, %v958
        %v960 = vpop.f32.mrb[0].mxu0
        %961 = vdwg.mxu0
        %v962 = vmul.f32 %v303, %v303
        %963 = vmatprep.subr.mxu0 0.0
        %v964 = vand.u32 %v304, 4294901760
        %965 = vmatpush1.msra.mxu0 %v964
        %966 = vmatprep.subr.mxu0 0.0
        %v967 = vand.u32 %v305, 4294901760
        %968 = vmatpush1.msra.mxu0 %v967
        %969 = vmatprep.subr.mxu0 0.0
        %v970 = vand.u32 %v306, 4294901760
        %971 = vmatpush1.msra.mxu0 %v970
        %972 = vmatprep.subr.mxu0 0.0
        %v973 = vand.u32 %v307, 4294901760
        %974 = vmatpush1.msra.mxu0 %v973
        %975 = vmatprep.subr.mxu0 0.0
        %v976 = vand.u32 %v308, 4294901760
        %977 = vmatpush1.msra.mxu0 %v976
        %978 = vmatprep.subr.mxu0 0.0
        %v979 = vand.u32 %v309, 4294901760
        %980 = vmatpush1.msra.mxu0 %v979
        %981 = vmatprep.subr.mxu0 0.0
        %v982 = vand.u32 %v310, 4294901760
        %983 = vmatpush1.msra.mxu0 %v982
        %984 = vmatprep.subr.mxu0 0.0
        %v985 = vand.u32 %v311, 4294901760
        %986 = vmatpush1.msra.mxu0 %v985
        %987 = vmatprep.subr.mxu0 0.0
        %v988 = vand.u32 %v312, 4294901760
        %989 = vmatpush1.msra.mxu0 %v988
        %990 = vmatprep.subr.mxu0 0.0
        %v991 = vand.u32 %v313, 4294901760
        %992 = vmatpush1.msra.mxu0 %v991
        %993 = vmatprep.subr.mxu0 0.0
        %v994 = vand.u32 %v314, 4294901760
        %995 = vmatpush1.msra.mxu0 %v994
        %996 = vmatprep.subr.mxu0 0.0
        %v997 = vand.u32 %v315, 4294901760
        %998 = vmatpush1.msra.mxu0 %v997
        %999 = vmatprep.subr.mxu0 0.0
        %v1000 = vand.u32 %v316, 4294901760
        %1001 = vmatpush1.msra.mxu0 %v1000
        %1002 = vmatprep.subr.mxu0 0.0
        %v1003 = vand.u32 %v317, 4294901760
        %1004 = vmatpush1.msra.mxu0 %v1003
        %1005 = vmatprep.subr.mxu0 0.0
        %v1006 = vand.u32 %v318, 4294901760
        %1007 = vmatpush1.msra.mxu0 %v1006
        %1008 = vmatprep.subr.mxu0 0.0
        %v1009 = vand.u32 %v319, 4294901760
        %1010 = vmatpush1.msra.mxu0 %v1009
        %1011 = vmatprep.subr.mxu0 0.0
        %1012 = vmatpush1.msra.mxu0 0.0
        %1013 = vmatprep.subr.mxu0 0.0
        %1014 = vmatpush1.msra.mxu0 0.0
        %1015 = vmatprep.subr.mxu0 0.0
        %1016 = vmatpush1.msra.mxu0 0.0
        %1017 = vmatprep.subr.mxu0 0.0
        %1018 = vmatpush1.msra.mxu0 0.0
        %1019 = vmatprep.subr.mxu0 0.0
        %1020 = vmatpush1.msra.mxu0 0.0
        %1021 = vmatprep.subr.mxu0 0.0
        %1022 = vmatpush1.msra.mxu0 0.0
        %1023 = vmatprep.subr.mxu0 0.0
        %1024 = vmatpush1.msra.mxu0 0.0
        %1025 = vmatprep.subr.mxu0 0.0
        %1026 = vmatpush1.msra.mxu0 0.0
        %1027 = vmatprep.subr.mxu0 0.0
        %1028 = vmatpush1.msra.mxu0 0.0
        %1029 = vmatprep.subr.mxu0 0.0
        %1030 = vmatpush1.msra.mxu0 0.0
        %1031 = vmatprep.subr.mxu0 0.0
        %1032 = vmatpush1.msra.mxu0 0.0
        %1033 = vmatprep.subr.mxu0 0.0
        %1034 = vmatpush1.msra.mxu0 0.0
        %1035 = vmatprep.subr.mxu0 0.0
        %1036 = vmatpush1.msra.mxu0 0.0
        %1037 = vmatprep.subr.mxu0 0.0
        %1038 = vmatpush1.msra.mxu0 0.0
        %1039 = vmatprep.subr.mxu0 0.0
        %1040 = vmatpush1.msra.mxu0 0.0
        %1041 = vmatprep.subr.mxu0 0.0
        %1042 = vmatpush1.msra.mxu0 0.0
        %1043 = vmatprep.mubr.f32.mxu0 0.0
        %v1044 = vand.u32 %v962, 4294901760
        %v1045 = vsub.f32 %v962, %v1044
        %v1046 = vand.u32 %v1045, 4294901760
        %v1047 = vsub.f32 %v1045, %v1046
        %v1048 = vand.u32 %v1047, 4294901760
        %1049 = vmatmul.mubr.f32.gmra.mrb[0].mxu0 %v1048
        %v1050 = vpop.f32.mrb[0].mxu0
        %v1051 = vadd.f32 0.0, %v1050
        %v1052 = vpop.f32.mrb[0].mxu0
        %1053 = vdwg.mxu0
        %1054 = vmatprep.subr.mxu0 0.0
        %v1055 = vand.u32 %v304, 4294901760
        %v1056 = vsub.f32 %v304, %v1055
        %v1057 = vand.u32 %v1056, 4294901760
        %v1058 = vsub.f32 %v1056, %v1057
        %v1059 = vand.u32 %v1058, 4294901760
        %1060 = vmatpush1.msra.mxu0 %v1059
        %1061 = vmatprep.subr.mxu0 0.0
        %v1062 = vand.u32 %v305, 4294901760
        %v1063 = vsub.f32 %v305, %v1062
        %v1064 = vand.u32 %v1063, 4294901760
        %v1065 = vsub.f32 %v1063, %v1064
        %v1066 = vand.u32 %v1065, 4294901760
        %1067 = vmatpush1.msra.mxu0 %v1066
        %1068 = vmatprep.subr.mxu0 0.0
        %v1069 = vand.u32 %v306, 4294901760
        %v1070 = vsub.f32 %v306, %v1069
        %v1071 = vand.u32 %v1070, 4294901760
        %v1072 = vsub.f32 %v1070, %v1071
        %v1073 = vand.u32 %v1072, 4294901760
        %1074 = vmatpush1.msra.mxu0 %v1073
        %1075 = vmatprep.subr.mxu0 0.0
        %v1076 = vand.u32 %v307, 4294901760
        %v1077 = vsub.f32 %v307, %v1076
        %v1078 = vand.u32 %v1077, 4294901760
        %v1079 = vsub.f32 %v1077, %v1078
        %v1080 = vand.u32 %v1079, 4294901760
        %1081 = vmatpush1.msra.mxu0 %v1080
        %1082 = vmatprep.subr.mxu0 0.0
        %v1083 = vand.u32 %v308, 4294901760
        %v1084 = vsub.f32 %v308, %v1083
        %v1085 = vand.u32 %v1084, 4294901760
        %v1086 = vsub.f32 %v1084, %v1085
        %v1087 = vand.u32 %v1086, 4294901760
        %1088 = vmatpush1.msra.mxu0 %v1087
        %1089 = vmatprep.subr.mxu0 0.0
        %v1090 = vand.u32 %v309, 4294901760
        %v1091 = vsub.f32 %v309, %v1090
        %v1092 = vand.u32 %v1091, 4294901760
        %v1093 = vsub.f32 %v1091, %v1092
        %v1094 = vand.u32 %v1093, 4294901760
        %1095 = vmatpush1.msra.mxu0 %v1094
        %1096 = vmatprep.subr.mxu0 0.0
        %v1097 = vand.u32 %v310, 4294901760
        %v1098 = vsub.f32 %v310, %v1097
        %v1099 = vand.u32 %v1098, 4294901760
        %v1100 = vsub.f32 %v1098, %v1099
        %v1101 = vand.u32 %v1100, 4294901760
        %1102 = vmatpush1.msra.mxu0 %v1101
        %1103 = vmatprep.subr.mxu0 0.0
        %v1104 = vand.u32 %v311, 4294901760
        %v1105 = vsub.f32 %v311, %v1104
        %v1106 = vand.u32 %v1105, 4294901760
        %v1107 = vsub.f32 %v1105, %v1106
        %v1108 = vand.u32 %v1107, 4294901760
        %1109 = vmatpush1.msra.mxu0 %v1108
        %1110 = vmatprep.subr.mxu0 0.0
        %v1111 = vand.u32 %v312, 4294901760
        %v1112 = vsub.f32 %v312, %v1111
        %v1113 = vand.u32 %v1112, 4294901760
        %v1114 = vsub.f32 %v1112, %v1113
        %v1115 = vand.u32 %v1114, 4294901760
        %1116 = vmatpush1.msra.mxu0 %v1115
        %1117 = vmatprep.subr.mxu0 0.0
        %v1118 = vand.u32 %v313, 4294901760
        %v1119 = vsub.f32 %v313, %v1118
        %v1120 = vand.u32 %v1119, 4294901760
        %v1121 = vsub.f32 %v1119, %v1120
        %v1122 = vand.u32 %v1121, 4294901760
        %1123 = vmatpush1.msra.mxu0 %v1122
        %1124 = vmatprep.subr.mxu0 0.0
        %v1125 = vand.u32 %v314, 4294901760
        %v1126 = vsub.f32 %v314, %v1125
        %v1127 = vand.u32 %v1126, 4294901760
        %v1128 = vsub.f32 %v1126, %v1127
        %v1129 = vand.u32 %v1128, 4294901760
        %1130 = vmatpush1.msra.mxu0 %v1129
        %1131 = vmatprep.subr.mxu0 0.0
        %v1132 = vand.u32 %v315, 4294901760
        %v1133 = vsub.f32 %v315, %v1132
        %v1134 = vand.u32 %v1133, 4294901760
        %v1135 = vsub.f32 %v1133, %v1134
        %v1136 = vand.u32 %v1135, 4294901760
        %1137 = vmatpush1.msra.mxu0 %v1136
        %1138 = vmatprep.subr.mxu0 0.0
        %v1139 = vand.u32 %v316, 4294901760
        %v1140 = vsub.f32 %v316, %v1139
        %v1141 = vand.u32 %v1140, 4294901760
        %v1142 = vsub.f32 %v1140, %v1141
        %v1143 = vand.u32 %v1142, 4294901760
        %1144 = vmatpush1.msra.mxu0 %v1143
        %1145 = vmatprep.subr.mxu0 0.0
        %v1146 = vand.u32 %v317, 4294901760
        %v1147 = vsub.f32 %v317, %v1146
        %v1148 = vand.u32 %v1147, 4294901760
        %v1149 = vsub.f32 %v1147, %v1148
        %v1150 = vand.u32 %v1149, 4294901760
        %1151 = vmatpush1.msra.mxu0 %v1150
        %1152 = vmatprep.subr.mxu0 0.0
        %v1153 = vand.u32 %v318, 4294901760
        %v1154 = vsub.f32 %v318, %v1153
        %v1155 = vand.u32 %v1154, 4294901760
        %v1156 = vsub.f32 %v1154, %v1155
        %v1157 = vand.u32 %v1156, 4294901760
        %1158 = vmatpush1.msra.mxu0 %v1157
        %1159 = vmatprep.subr.mxu0 0.0
        %v1160 = vand.u32 %v319, 4294901760
        %v1161 = vsub.f32 %v319, %v1160
        %v1162 = vand.u32 %v1161, 4294901760
        %v1163 = vsub.f32 %v1161, %v1162
        %v1164 = vand.u32 %v1163, 4294901760
        %1165 = vmatpush1.msra.mxu0 %v1164
        %1166 = vmatprep.subr.mxu0 0.0
        %1167 = vmatpush1.msra.mxu0 0.0
        %1168 = vmatprep.subr.mxu0 0.0
        %1169 = vmatpush1.msra.mxu0 0.0
        %1170 = vmatprep.subr.mxu0 0.0
        %1171 = vmatpush1.msra.mxu0 0.0
        %1172 = vmatprep.subr.mxu0 0.0
        %1173 = vmatpush1.msra.mxu0 0.0
        %1174 = vmatprep.subr.mxu0 0.0
        %1175 = vmatpush1.msra.mxu0 0.0
        %1176 = vmatprep.subr.mxu0 0.0
        %1177 = vmatpush1.msra.mxu0 0.0
        %1178 = vmatprep.subr.mxu0 0.0
        %1179 = vmatpush1.msra.mxu0 0.0
        %1180 = vmatprep.subr.mxu0 0.0
        %1181 = vmatpush1.msra.mxu0 0.0
        %1182 = vmatprep.subr.mxu0 0.0
        %1183 = vmatpush1.msra.mxu0 0.0
        %1184 = vmatprep.subr.mxu0 0.0
        %1185 = vmatpush1.msra.mxu0 0.0
        %1186 = vmatprep.subr.mxu0 0.0
        %1187 = vmatpush1.msra.mxu0 0.0
        %1188 = vmatprep.subr.mxu0 0.0
        %1189 = vmatpush1.msra.mxu0 0.0
        %1190 = vmatprep.subr.mxu0 0.0
        %1191 = vmatpush1.msra.mxu0 0.0
        %1192 = vmatprep.subr.mxu0 0.0
        %1193 = vmatpush1.msra.mxu0 0.0
        %1194 = vmatprep.subr.mxu0 0.0
        %1195 = vmatpush1.msra.mxu0 0.0
        %1196 = vmatprep.subr.mxu0 0.0
        %1197 = vmatpush1.msra.mxu0 0.0
        %1198 = vmatprep.mubr.f32.mxu0 0.0
        %v1199 = vand.u32 %v962, 4294901760
        %1200 = vmatmul.mubr.f32.gmra.mrb[0].mxu0 %v1199
        %v1201 = vpop.f32.mrb[0].mxu0
        %v1202 = vadd.f32 %v1051, %v1201
        %v1203 = vpop.f32.mrb[0].mxu0
        %1204 = vdwg.mxu0
        %1205 = vmatprep.subr.mxu0 0.0
        %v1206 = vand.u32 %v304, 4294901760
        %v1207 = vsub.f32 %v304, %v1206
        %1208 = vmatpush1.msra.mxu0 %v1207
        %1209 = vmatprep.subr.mxu0 0.0
        %v1210 = vand.u32 %v305, 4294901760
        %v1211 = vsub.f32 %v305, %v1210
        %1212 = vmatpush1.msra.mxu0 %v1211
        %1213 = vmatprep.subr.mxu0 0.0
        %v1214 = vand.u32 %v306, 4294901760
        %v1215 = vsub.f32 %v306, %v1214
        %1216 = vmatpush1.msra.mxu0 %v1215
        %1217 = vmatprep.subr.mxu0 0.0
        %v1218 = vand.u32 %v307, 4294901760
        %v1219 = vsub.f32 %v307, %v1218
        %1220 = vmatpush1.msra.mxu0 %v1219
        %1221 = vmatprep.subr.mxu0 0.0
        %v1222 = vand.u32 %v308, 4294901760
        %v1223 = vsub.f32 %v308, %v1222
        %1224 = vmatpush1.msra.mxu0 %v1223
        %1225 = vmatprep.subr.mxu0 0.0
        %v1226 = vand.u32 %v309, 4294901760
        %v1227 = vsub.f32 %v309, %v1226
        %1228 = vmatpush1.msra.mxu0 %v1227
        %1229 = vmatprep.subr.mxu0 0.0
        %v1230 = vand.u32 %v310, 4294901760
        %v1231 = vsub.f32 %v310, %v1230
        %1232 = vmatpush1.msra.mxu0 %v1231
        %1233 = vmatprep.subr.mxu0 0.0
        %v1234 = vand.u32 %v311, 4294901760
        %v1235 = vsub.f32 %v311, %v1234
        %1236 = vmatpush1.msra.mxu0 %v1235
        %1237 = vmatprep.subr.mxu0 0.0
        %v1238 = vand.u32 %v312, 4294901760
        %v1239 = vsub.f32 %v312, %v1238
        %1240 = vmatpush1.msra.mxu0 %v1239
        %1241 = vmatprep.subr.mxu0 0.0
        %v1242 = vand.u32 %v313, 4294901760
        %v1243 = vsub.f32 %v313, %v1242
        %1244 = vmatpush1.msra.mxu0 %v1243
        %1245 = vmatprep.subr.mxu0 0.0
        %v1246 = vand.u32 %v314, 4294901760
        %v1247 = vsub.f32 %v314, %v1246
        %1248 = vmatpush1.msra.mxu0 %v1247
        %1249 = vmatprep.subr.mxu0 0.0
        %v1250 = vand.u32 %v315, 4294901760
        %v1251 = vsub.f32 %v315, %v1250
        %1252 = vmatpush1.msra.mxu0 %v1251
        %1253 = vmatprep.subr.mxu0 0.0
        %v1254 = vand.u32 %v316, 4294901760
        %v1255 = vsub.f32 %v316, %v1254
        %1256 = vmatpush1.msra.mxu0 %v1255
        %1257 = vmatprep.subr.mxu0 0.0
        %v1258 = vand.u32 %v317, 4294901760
        %v1259 = vsub.f32 %v317, %v1258
        %1260 = vmatpush1.msra.mxu0 %v1259
        %1261 = vmatprep.subr.mxu0 0.0
        %v1262 = vand.u32 %v318, 4294901760
        %v1263 = vsub.f32 %v318, %v1262
        %1264 = vmatpush1.msra.mxu0 %v1263
        %1265 = vmatprep.subr.mxu0 0.0
        %v1266 = vand.u32 %v319, 4294901760
        %v1267 = vsub.f32 %v319, %v1266
        %1268 = vmatpush1.msra.mxu0 %v1267
        %1269 = vmatprep.subr.mxu0 0.0
        %1270 = vmatpush1.msra.mxu0 0.0
        %1271 = vmatprep.subr.mxu0 0.0
        %1272 = vmatpush1.msra.mxu0 0.0
        %1273 = vmatprep.subr.mxu0 0.0
        %1274 = vmatpush1.msra.mxu0 0.0
        %1275 = vmatprep.subr.mxu0 0.0
        %1276 = vmatpush1.msra.mxu0 0.0
        %1277 = vmatprep.subr.mxu0 0.0
        %1278 = vmatpush1.msra.mxu0 0.0
        %1279 = vmatprep.subr.mxu0 0.0
        %1280 = vmatpush1.msra.mxu0 0.0
        %1281 = vmatprep.subr.mxu0 0.0
        %1282 = vmatpush1.msra.mxu0 0.0
        %1283 = vmatprep.subr.mxu0 0.0
        %1284 = vmatpush1.msra.mxu0 0.0
        %1285 = vmatprep.subr.mxu0 0.0
        %1286 = vmatpush1.msra.mxu0 0.0
        %1287 = vmatprep.subr.mxu0 0.0
        %1288 = vmatpush1.msra.mxu0 0.0
        %1289 = vmatprep.subr.mxu0 0.0
        %1290 = vmatpush1.msra.mxu0 0.0
        %1291 = vmatprep.subr.mxu0 0.0
        %1292 = vmatpush1.msra.mxu0 0.0
        %1293 = vmatprep.subr.mxu0 0.0
        %1294 = vmatpush1.msra.mxu0 0.0
        %1295 = vmatprep.subr.mxu0 0.0
        %1296 = vmatpush1.msra.mxu0 0.0
        %1297 = vmatprep.subr.mxu0 0.0
        %1298 = vmatpush1.msra.mxu0 0.0
        %1299 = vmatprep.subr.mxu0 0.0
        %1300 = vmatpush1.msra.mxu0 0.0
        %1301 = vmatprep.mubr.f32.mxu0 0.0
        %v1302 = vand.u32 %v962, 4294901760
        %v1303 = vsub.f32 %v962, %v1302
        %1304 = vmatmul.mubr.f32.gmra.mrb[0].mxu0 %v1303
        %v1305 = vpop.f32.mrb[0].mxu0
        %v1306 = vadd.f32 %v1202, %v1305
        %v1307 = vpop.f32.mrb[0].mxu0
        %1308 = vdwg.mxu0
        %1309 = vmatprep.subr.mxu0 0.0
        %v1310 = vand.u32 %v304, 4294901760
        %1311 = vmatpush1.msra.mxu0 %v1310
        %1312 = vmatprep.subr.mxu0 0.0
        %v1313 = vand.u32 %v305, 4294901760
        %1314 = vmatpush1.msra.mxu0 %v1313
        %1315 = vmatprep.subr.mxu0 0.0
        %v1316 = vand.u32 %v306, 4294901760
        %1317 = vmatpush1.msra.mxu0 %v1316
        %1318 = vmatprep.subr.mxu0 0.0
        %v1319 = vand.u32 %v307, 4294901760
        %1320 = vmatpush1.msra.mxu0 %v1319
        %1321 = vmatprep.subr.mxu0 0.0
        %v1322 = vand.u32 %v308, 4294901760
        %1323 = vmatpush1.msra.mxu0 %v1322
        %1324 = vmatprep.subr.mxu0 0.0
        %v1325 = vand.u32 %v309, 4294901760
        %1326 = vmatpush1.msra.mxu0 %v1325
        %1327 = vmatprep.subr.mxu0 0.0
        %v1328 = vand.u32 %v310, 4294901760
        %1329 = vmatpush1.msra.mxu0 %v1328
        %1330 = vmatprep.subr.mxu0 0.0
        %v1331 = vand.u32 %v311, 4294901760
        %1332 = vmatpush1.msra.mxu0 %v1331
        %1333 = vmatprep.subr.mxu0 0.0
        %v1334 = vand.u32 %v312, 4294901760
        %1335 = vmatpush1.msra.mxu0 %v1334
        %1336 = vmatprep.subr.mxu0 0.0
        %v1337 = vand.u32 %v313, 4294901760
        %1338 = vmatpush1.msra.mxu0 %v1337
        %1339 = vmatprep.subr.mxu0 0.0
        %v1340 = vand.u32 %v314, 4294901760
        %1341 = vmatpush1.msra.mxu0 %v1340
        %1342 = vmatprep.subr.mxu0 0.0
        %v1343 = vand.u32 %v315, 4294901760
        %1344 = vmatpush1.msra.mxu0 %v1343
        %1345 = vmatprep.subr.mxu0 0.0
        %v1346 = vand.u32 %v316, 4294901760
        %1347 = vmatpush1.msra.mxu0 %v1346
        %1348 = vmatprep.subr.mxu0 0.0
        %v1349 = vand.u32 %v317, 4294901760
        %1350 = vmatpush1.msra.mxu0 %v1349
        %1351 = vmatprep.subr.mxu0 0.0
        %v1352 = vand.u32 %v318, 4294901760
        %1353 = vmatpush1.msra.mxu0 %v1352
        %1354 = vmatprep.subr.mxu0 0.0
        %v1355 = vand.u32 %v319, 4294901760
        %1356 = vmatpush1.msra.mxu0 %v1355
        %1357 = vmatprep.subr.mxu0 0.0
        %1358 = vmatpush1.msra.mxu0 0.0
        %1359 = vmatprep.subr.mxu0 0.0
        %1360 = vmatpush1.msra.mxu0 0.0
        %1361 = vmatprep.subr.mxu0 0.0
        %1362 = vmatpush1.msra.mxu0 0.0
        %1363 = vmatprep.subr.mxu0 0.0
        %1364 = vmatpush1.msra.mxu0 0.0
        %1365 = vmatprep.subr.mxu0 0.0
        %1366 = vmatpush1.msra.mxu0 0.0
        %1367 = vmatprep.subr.mxu0 0.0
        %1368 = vmatpush1.msra.mxu0 0.0
        %1369 = vmatprep.subr.mxu0 0.0
        %1370 = vmatpush1.msra.mxu0 0.0
        %1371 = vmatprep.subr.mxu0 0.0
        %1372 = vmatpush1.msra.mxu0 0.0
        %1373 = vmatprep.subr.mxu0 0.0
        %1374 = vmatpush1.msra.mxu0 0.0
        %1375 = vmatprep.subr.mxu0 0.0
        %1376 = vmatpush1.msra.mxu0 0.0
        %1377 = vmatprep.subr.mxu0 0.0
        %1378 = vmatpush1.msra.mxu0 0.0
        %1379 = vmatprep.subr.mxu0 0.0
        %1380 = vmatpush1.msra.mxu0 0.0
        %1381 = vmatprep.subr.mxu0 0.0
        %1382 = vmatpush1.msra.mxu0 0.0
        %1383 = vmatprep.subr.mxu0 0.0
        %1384 = vmatpush1.msra.mxu0 0.0
        %1385 = vmatprep.subr.mxu0 0.0
        %1386 = vmatpush1.msra.mxu0 0.0
        %1387 = vmatprep.subr.mxu0 0.0
        %1388 = vmatpush1.msra.mxu0 0.0
        %1389 = vmatprep.mubr.f32.mxu0 0.0
        %v1390 = vand.u32 %v962, 4294901760
        %v1391 = vsub.f32 %v962, %v1390
        %v1392 = vand.u32 %v1391, 4294901760
        %1393 = vmatmul.mubr.f32.gmra.mrb[0].mxu0 %v1392
        %v1394 = vpop.f32.mrb[0].mxu0
        %v1395 = vadd.f32 %v1306, %v1394
        %v1396 = vpop.f32.mrb[0].mxu0
        %1397 = vdwg.mxu0
        %1398 = vmatprep.subr.mxu0 0.0
        %v1399 = vand.u32 %v304, 4294901760
        %v1400 = vsub.f32 %v304, %v1399
        %v1401 = vand.u32 %v1400, 4294901760
        %1402 = vmatpush1.msra.mxu0 %v1401
        %1403 = vmatprep.subr.mxu0 0.0
        %v1404 = vand.u32 %v305, 4294901760
        %v1405 = vsub.f32 %v305, %v1404
        %v1406 = vand.u32 %v1405, 4294901760
        %1407 = vmatpush1.msra.mxu0 %v1406
        %1408 = vmatprep.subr.mxu0 0.0
        %v1409 = vand.u32 %v306, 4294901760
        %v1410 = vsub.f32 %v306, %v1409
        %v1411 = vand.u32 %v1410, 4294901760
        %1412 = vmatpush1.msra.mxu0 %v1411
        %1413 = vmatprep.subr.mxu0 0.0
        %v1414 = vand.u32 %v307, 4294901760
        %v1415 = vsub.f32 %v307, %v1414
        %v1416 = vand.u32 %v1415, 4294901760
        %1417 = vmatpush1.msra.mxu0 %v1416
        %1418 = vmatprep.subr.mxu0 0.0
        %v1419 = vand.u32 %v308, 4294901760
        %v1420 = vsub.f32 %v308, %v1419
        %v1421 = vand.u32 %v1420, 4294901760
        %1422 = vmatpush1.msra.mxu0 %v1421
        %1423 = vmatprep.subr.mxu0 0.0
        %v1424 = vand.u32 %v309, 4294901760
        %v1425 = vsub.f32 %v309, %v1424
        %v1426 = vand.u32 %v1425, 4294901760
        %1427 = vmatpush1.msra.mxu0 %v1426
        %1428 = vmatprep.subr.mxu0 0.0
        %v1429 = vand.u32 %v310, 4294901760
        %v1430 = vsub.f32 %v310, %v1429
        %v1431 = vand.u32 %v1430, 4294901760
        %1432 = vmatpush1.msra.mxu0 %v1431
        %1433 = vmatprep.subr.mxu0 0.0
        %v1434 = vand.u32 %v311, 4294901760
        %v1435 = vsub.f32 %v311, %v1434
        %v1436 = vand.u32 %v1435, 4294901760
        %1437 = vmatpush1.msra.mxu0 %v1436
        %1438 = vmatprep.subr.mxu0 0.0
        %v1439 = vand.u32 %v312, 4294901760
        %v1440 = vsub.f32 %v312, %v1439
        %v1441 = vand.u32 %v1440, 4294901760
        %1442 = vmatpush1.msra.mxu0 %v1441
        %1443 = vmatprep.subr.mxu0 0.0
        %v1444 = vand.u32 %v313, 4294901760
        %v1445 = vsub.f32 %v313, %v1444
        %v1446 = vand.u32 %v1445, 4294901760
        %1447 = vmatpush1.msra.mxu0 %v1446
        %1448 = vmatprep.subr.mxu0 0.0
        %v1449 = vand.u32 %v314, 4294901760
        %v1450 = vsub.f32 %v314, %v1449
        %v1451 = vand.u32 %v1450, 4294901760
        %1452 = vmatpush1.msra.mxu0 %v1451
        %1453 = vmatprep.subr.mxu0 0.0
        %v1454 = vand.u32 %v315, 4294901760
        %v1455 = vsub.f32 %v315, %v1454
        %v1456 = vand.u32 %v1455, 4294901760
        %1457 = vmatpush1.msra.mxu0 %v1456
        %1458 = vmatprep.subr.mxu0 0.0
        %v1459 = vand.u32 %v316, 4294901760
        %v1460 = vsub.f32 %v316, %v1459
        %v1461 = vand.u32 %v1460, 4294901760
        %1462 = vmatpush1.msra.mxu0 %v1461
        %1463 = vmatprep.subr.mxu0 0.0
        %v1464 = vand.u32 %v317, 4294901760
        %v1465 = vsub.f32 %v317, %v1464
        %v1466 = vand.u32 %v1465, 4294901760
        %1467 = vmatpush1.msra.mxu0 %v1466
        %1468 = vmatprep.subr.mxu0 0.0
        %v1469 = vand.u32 %v318, 4294901760
        %v1470 = vsub.f32 %v318, %v1469
        %v1471 = vand.u32 %v1470, 4294901760
        %1472 = vmatpush1.msra.mxu0 %v1471
        %1473 = vmatprep.subr.mxu0 0.0
        %v1474 = vand.u32 %v319, 4294901760
        %v1475 = vsub.f32 %v319, %v1474
        %v1476 = vand.u32 %v1475, 4294901760
        %1477 = vmatpush1.msra.mxu0 %v1476
        %1478 = vmatprep.subr.mxu0 0.0
        %1479 = vmatpush1.msra.mxu0 0.0
        %1480 = vmatprep.subr.mxu0 0.0
        %1481 = vmatpush1.msra.mxu0 0.0
        %1482 = vmatprep.subr.mxu0 0.0
        %1483 = vmatpush1.msra.mxu0 0.0
        %1484 = vmatprep.subr.mxu0 0.0
        %1485 = vmatpush1.msra.mxu0 0.0
        %1486 = vmatprep.subr.mxu0 0.0
        %1487 = vmatpush1.msra.mxu0 0.0
        %1488 = vmatprep.subr.mxu0 0.0
        %1489 = vmatpush1.msra.mxu0 0.0
        %1490 = vmatprep.subr.mxu0 0.0
        %1491 = vmatpush1.msra.mxu0 0.0
        %1492 = vmatprep.subr.mxu0 0.0
        %1493 = vmatpush1.msra.mxu0 0.0
        %1494 = vmatprep.subr.mxu0 0.0
        %1495 = vmatpush1.msra.mxu0 0.0
        %1496 = vmatprep.subr.mxu0 0.0
        %1497 = vmatpush1.msra.mxu0 0.0
        %1498 = vmatprep.subr.mxu0 0.0
        %1499 = vmatpush1.msra.mxu0 0.0
        %1500 = vmatprep.subr.mxu0 0.0
        %1501 = vmatpush1.msra.mxu0 0.0
        %1502 = vmatprep.subr.mxu0 0.0
        %1503 = vmatpush1.msra.mxu0 0.0
        %1504 = vmatprep.subr.mxu0 0.0
        %1505 = vmatpush1.msra.mxu0 0.0
        %1506 = vmatprep.subr.mxu0 0.0
        %1507 = vmatpush1.msra.mxu0 0.0
        %1508 = vmatprep.subr.mxu0 0.0
        %1509 = vmatpush1.msra.mxu0 0.0
        %1510 = vmatprep.mubr.f32.mxu0 0.0
        %v1511 = vand.u32 %v962, 4294901760
        %1512 = vmatmul.mubr.f32.gmra.mrb[0].mxu0 %v1511
        %v1513 = vpop.f32.mrb[0].mxu0
        %v1514 = vadd.f32 %v1395, %v1513
        %v1515 = vpop.f32.mrb[0].mxu0
        %1516 = vdwg.mxu0
        %1517 = vmatprep.subr.mxu0 0.0
        %v1518 = vand.u32 %v304, 4294901760
        %1519 = vmatpush1.msra.mxu0 %v1518
        %1520 = vmatprep.subr.mxu0 0.0
        %v1521 = vand.u32 %v305, 4294901760
        %1522 = vmatpush1.msra.mxu0 %v1521
        %1523 = vmatprep.subr.mxu0 0.0
        %v1524 = vand.u32 %v306, 4294901760
        %1525 = vmatpush1.msra.mxu0 %v1524
        %1526 = vmatprep.subr.mxu0 0.0
        %v1527 = vand.u32 %v307, 4294901760
        %1528 = vmatpush1.msra.mxu0 %v1527
        %1529 = vmatprep.subr.mxu0 0.0
        %v1530 = vand.u32 %v308, 4294901760
        %1531 = vmatpush1.msra.mxu0 %v1530
        %1532 = vmatprep.subr.mxu0 0.0
        %v1533 = vand.u32 %v309, 4294901760
        %1534 = vmatpush1.msra.mxu0 %v1533
        %1535 = vmatprep.subr.mxu0 0.0
        %v1536 = vand.u32 %v310, 4294901760
        %1537 = vmatpush1.msra.mxu0 %v1536
        %1538 = vmatprep.subr.mxu0 0.0
        %v1539 = vand.u32 %v311, 4294901760
        %1540 = vmatpush1.msra.mxu0 %v1539
        %1541 = vmatprep.subr.mxu0 0.0
        %v1542 = vand.u32 %v312, 4294901760
        %1543 = vmatpush1.msra.mxu0 %v1542
        %1544 = vmatprep.subr.mxu0 0.0
        %v1545 = vand.u32 %v313, 4294901760
        %1546 = vmatpush1.msra.mxu0 %v1545
        %1547 = vmatprep.subr.mxu0 0.0
        %v1548 = vand.u32 %v314, 4294901760
        %1549 = vmatpush1.msra.mxu0 %v1548
        %1550 = vmatprep.subr.mxu0 0.0
        %v1551 = vand.u32 %v315, 4294901760
        %1552 = vmatpush1.msra.mxu0 %v1551
        %1553 = vmatprep.subr.mxu0 0.0
        %v1554 = vand.u32 %v316, 4294901760
        %1555 = vmatpush1.msra.mxu0 %v1554
        %1556 = vmatprep.subr.mxu0 0.0
        %v1557 = vand.u32 %v317, 4294901760
        %1558 = vmatpush1.msra.mxu0 %v1557
        %1559 = vmatprep.subr.mxu0 0.0
        %v1560 = vand.u32 %v318, 4294901760
        %1561 = vmatpush1.msra.mxu0 %v1560
        %1562 = vmatprep.subr.mxu0 0.0
        %v1563 = vand.u32 %v319, 4294901760
        %1564 = vmatpush1.msra.mxu0 %v1563
        %1565 = vmatprep.subr.mxu0 0.0
        %1566 = vmatpush1.msra.mxu0 0.0
        %1567 = vmatprep.subr.mxu0 0.0
        %1568 = vmatpush1.msra.mxu0 0.0
        %1569 = vmatprep.subr.mxu0 0.0
        %1570 = vmatpush1.msra.mxu0 0.0
        %1571 = vmatprep.subr.mxu0 0.0
        %1572 = vmatpush1.msra.mxu0 0.0
        %1573 = vmatprep.subr.mxu0 0.0
        %1574 = vmatpush1.msra.mxu0 0.0
        %1575 = vmatprep.subr.mxu0 0.0
        %1576 = vmatpush1.msra.mxu0 0.0
        %1577 = vmatprep.subr.mxu0 0.0
        %1578 = vmatpush1.msra.mxu0 0.0
        %1579 = vmatprep.subr.mxu0 0.0
        %1580 = vmatpush1.msra.mxu0 0.0
        %1581 = vmatprep.subr.mxu0 0.0
        %1582 = vmatpush1.msra.mxu0 0.0
        %1583 = vmatprep.subr.mxu0 0.0
        %1584 = vmatpush1.msra.mxu0 0.0
        %1585 = vmatprep.subr.mxu0 0.0
        %1586 = vmatpush1.msra.mxu0 0.0
        %1587 = vmatprep.subr.mxu0 0.0
        %1588 = vmatpush1.msra.mxu0 0.0
        %1589 = vmatprep.subr.mxu0 0.0
        %1590 = vmatpush1.msra.mxu0 0.0
        %1591 = vmatprep.subr.mxu0 0.0
        %1592 = vmatpush1.msra.mxu0 0.0
        %1593 = vmatprep.subr.mxu0 0.0
        %1594 = vmatpush1.msra.mxu0 0.0
        %1595 = vmatprep.subr.mxu0 0.0
        %1596 = vmatpush1.msra.mxu0 0.0
        %1597 = vmatprep.mubr.f32.mxu0 0.0
        %v1598 = vand.u32 %v962, 4294901760
        %1599 = vmatmul.mubr.f32.gmra.mrb[0].mxu0 %v1598
        %v1600 = vpop.f32.mrb[0].mxu0
        %v1601 = vadd.f32 %v1514, %v1600
        %v1602 = vpop.f32.mrb[0].mxu0
        %1603 = vdwg.mxu0
        %v1604 = vmax.f32 %v959, 1e-24
        %v1605 = vrsqrt.pop %v1604
        %v1606 = vmax.f32 %v1601, 1e-24
        %v1607 = vrsqrt.pop %v1606
        %v1608 = vld [vmem:[%s2] sm:$0x1]
        %v1610 = vlaneseq
        %v1611 = vshrl.u32 %v1610, 7
        %v1612 = vsub.s32 0, %v1611
        %v1613 = vrot.slane %v1608, %v1612
        %v1615 = vmul.f32 %v1605, %v1613
        %v1616 = vmul.f32 %v302, %v1615
        %1617 = vst [vmem:[%s294] sm:$0xff] %v1616
        %v1618 = vmul.f32 %v303, %v1607
        %1619 = vst [vmem:[%s301] sm:$0xff] %v1618
        %s1620 = sand.u32 %s131, 1
        %s1621 = scalar_lea.sflag [#allocation4], %s1620
        %s1622 = sand.u32 %s131, 1
        %s1623 = smul.addr %s1622, 8
        %s1624 = scalar_lea.vmem [#allocation8], %s1623
        %s1625 = sand.u32 %s157, 1
        %s1626 = scalar_lea.sflag [#allocation10], %s1625
        %s1627 = sand.u32 %s157, 1
        %s1628 = smul.addr %s1627, 8
        %s1629 = scalar_lea.vmem [#allocation9], %s1628
        // Predicated region
        $region49: #{tpu_custom_call.1} parent=35 // pred_check
          %p1630 = pneg %p141
        $region50: #{tpu_custom_call.1} parent=35 // pred_check_branch
          %1632 = sbr.rel (%p1630) target = $region52
        $region51: #{tpu_custom_call.1} parent=35 // pred_region
          %s1634 = ssub.s32 128, 128
          %1635 = vsyncadd %s1621, %s1634
          %s1636 = smul.addr %s29, 128
          %s1637 = scalar_lea.hbm %s4, %s1636
          %s1639 = sshll.u32 %s1624, 4
          %s1640 = int_to_ptr.vmem [resolvable:$true] %s1639
          %1642 = dma.vmem_to_hbm [thread:$0]  %s1640, 128, %s1637, %s1621
        $region52: #{tpu_custom_call.1} parent=35 // pred_fallthru
          _
        // Predicated region
        $region53: #{tpu_custom_call.1} parent=35 // pred_check
          %p1643 = pneg %p167
        $region54: #{tpu_custom_call.1} parent=35 // pred_check_branch
          %1645 = sbr.rel (%p1643) target = $region56
        $region55: #{tpu_custom_call.1} parent=35 // pred_region
          %s1647 = ssub.s32 128, 128
          %1648 = vsyncadd %s1626, %s1647
          %s1649 = smul.addr %s29, 128
          %s1650 = scalar_lea.hbm %s5, %s1649
          %s1652 = sshll.u32 %s1629, 4
          %s1653 = int_to_ptr.vmem [resolvable:$true] %s1652
          %1655 = dma.vmem_to_hbm [thread:$0]  %s1653, 128, %s1650, %s1626
        $region56: #{tpu_custom_call.1} parent=35 // pred_fallthru
          _
      $region36: #{tpu_custom_call.1} parent=5 // pred_fallthru
        _
      %p1656 = scmp.le.s32.totalorder 2, %s24
      // Predicated region
      $region57: #{tpu_custom_call.1} parent=5 // pred_check
        %p1657 = pneg %p1656
      $region58: #{tpu_custom_call.1} parent=5 // pred_check_branch
        %1659 = sbr.rel (%p1657) target = $region60
      $region59: #{tpu_custom_call.1} parent=5 // pred_region
        %s1660 = ssub.s32 %s24, 2
        // Predicated region
        $region61: #{tpu_custom_call.1} parent=59 // pred_check
          %p1661 = pneg %p147
        $region62: #{tpu_custom_call.1} parent=59 // pred_check_branch
          %1663 = sbr.rel (%p1661) target = $region64
        $region63: #{tpu_custom_call.1} parent=59 // pred_region
          %s1664 = sand.u32 %s132, 1
          %s1665 = scalar_lea.sflag [#allocation4], %s1664
          %s1666 = sand.u32 %s132, 1
          %s1667 = smul.addr %s1666, 8
          %s1668 = scalar_lea.vmem [#allocation8], %s1667
          %1669 = dma.done %s1665, 128
        $region64: #{tpu_custom_call.1} parent=59 // pred_fallthru
          _
        // Predicated region
        $region65: #{tpu_custom_call.1} parent=59 // pred_check
          %p1670 = pneg %p173
        $region66: #{tpu_custom_call.1} parent=59 // pred_check_branch
          %1672 = sbr.rel (%p1670) target = $region68
        $region67: #{tpu_custom_call.1} parent=59 // pred_region
          %s1673 = sand.u32 %s158, 1
          %s1674 = scalar_lea.sflag [#allocation10], %s1673
          %s1675 = sand.u32 %s158, 1
          %s1676 = smul.addr %s1675, 8
          %s1677 = scalar_lea.vmem [#allocation9], %s1676
          %1678 = dma.done %s1674, 128
        $region68: #{tpu_custom_call.1} parent=59 // pred_fallthru
          _
      $region60: #{tpu_custom_call.1} parent=5 // pred_fallthru
        _
    $region6: #{tpu_custom_call.1} parent=1 // loop_footer
      %s28 = sadd.s32 1, %s24
    $region7: #{tpu_custom_call.1} parent=1 // loop_footer_branch
      %23 = sbr.rel target = $region3
    $region8: #{tpu_custom_call.1} parent=1 // loop_exit
      _
    %1679 = vsyncpa [#allocation3], 1
    %s1680 = scalar_lea.sflag [#allocation3], 1
    %1681 = vsyncpa %s1680, 1
    %1682 = vsyncpa [#allocation6], 1
    %s1683 = scalar_lea.sflag [#allocation6], 1
    %1684 = vsyncpa %s1683, 1
    %1685 = vsyncpa [#allocation4], 1
    %s1686 = scalar_lea.sflag [#allocation4], 1
    %1687 = vsyncpa %s1686, 1
    %1688 = vsyncpa [#allocation10], 1
    %s1689 = scalar_lea.sflag [#allocation10], 1
    %1690 = vsyncpa %s1689, 1

</llo_original>
